<compile_context>
chip_gen: v5e
topology: v5e:2x2
jax: 0.10.0
libtpu: 0.0.40
codegen_flags: <defaults>
</compile_context>

<pallas_src>
import functools

import jax
import jax.numpy as jnp
from jax import lax
from jax.experimental import pallas as pl
from jax.experimental.pallas import tpu as pltpu

IN_DIM = 768     # 'large' not in model_save_dir -> input_size=768
HID = 128        # LSTM hidden size
FC1 = 64
NUM_CLASSES = 20


def _lstm_recurrence_kernel(gx_ref, whh_ref, h_out_ref, h_sc, c_sc, *, t_chunk):
    """Sequential LSTM recurrence over one chunk of T_CHUNK time steps.

    gx_ref : (T_CHUNK, B, 4H) bf16 -- precomputed x@W_ih^T + bias
    whh_ref: (HID, 4H)        bf16 -- W_hh^T, resident across the whole grid
    h_out_ref: (B, HID)       f32  -- final hidden state h_T (written on last chunk)
    h_sc, c_sc: (B, HID)      f32  -- LSTM state, persists across grid steps
    """
    chunk = pl.program_id(0)

    # Zero-init LSTM state (PyTorch default h0 = c0 = 0).
    @pl.when(chunk == 0)
    def _():
        h_sc[...] = jnp.zeros_like(h_sc)
        c_sc[...] = jnp.zeros_like(c_sc)

    # W_hh^T stays resident in VMEM (only 128 KiB in bf16, so default
    # double-buffering of this constant-index input is negligible).
    whh = whh_ref[...]                                            # (HID, 4H)

    def step(k, carry):
        # Hoisted input-projection gates for this time step.
        gx = gx_ref[k].astype(jnp.float32)                        # (B, 4H)
        gates = gx + jnp.dot(h_sc[...].astype(jnp.bfloat16), whh,
                             preferred_element_type=jnp.float32)  # (B, 4H) f32

        # PyTorch gate order: i, f, g, o
        i_g = jax.nn.sigmoid(gates[:, 0 * HID:1 * HID])
        f_g = jax.nn.sigmoid(gates[:, 1 * HID:2 * HID])
        g_g = jnp.tanh(gates[:, 2 * HID:3 * HID])
        o_g = jax.nn.sigmoid(gates[:, 3 * HID:4 * HID])

        c_new = f_g * c_sc[...] + i_g * g_g
        c_sc[...] = c_new
        h_sc[...] = o_g * jnp.tanh(c_new)
        return carry

    # Unrolled so the LLO scheduler can interleave MXU / VPU / EUP work.
    lax.fori_loop(0, t_chunk, step, 0, unroll=True)

    # Resident output block: write h_T once, on the last chunk.
    @pl.when(chunk == pl.num_programs(0) - 1)
    def _():
        h_out_ref[...] = h_sc[...]


def _largest_divisor_leq(n, cap):
    for c in range(min(n, cap), 0, -1):
        if n % c == 0:
            return c
    return 1


@functools.partial(jax.jit, static_argnames=("t_chunk",))
def lstm_over_bert(x, w_ih, w_hh, b_ih, b_hh, w1, b1, w2, b2, *, t_chunk=None):
    """x: (T, B, IN_DIM) float32 (seq-major, nn.LSTM batch_first=False).
       Weights follow PyTorch shapes: w_ih (4H, IN), w_hh (4H, H),
       b_ih/b_hh (4H,), w1 (64, 128), b1 (64,), w2 (20, 64), b2 (20,)."""
    T, B, _ = x.shape
    if t_chunk is None:
        t_chunk = _largest_divisor_leq(T, 64)
    assert T % t_chunk == 0, "T must be divisible by t_chunk"
    n_chunks = T // t_chunk

    # ---- Hoisted, time-independent input projection: one big MXU-friendly GEMM
    # (bf16 operands, f32 accumulation), with the bias folded in here so it is
    # out of the recurrence hot path.
    wih_t = jnp.transpose(w_ih).astype(jnp.bfloat16)              # (IN_DIM, 4H)
    bias = (b_ih + b_hh).astype(jnp.float32)                      # (4H,)
    gx = jnp.dot(x.reshape(T * B, IN_DIM).astype(jnp.bfloat16), wih_t,
                 preferred_element_type=jnp.float32) + bias
    gx = gx.reshape(T, B, 4 * HID).astype(jnp.bfloat16)           # (T, B, 4H)

    whh_t = jnp.transpose(w_hh).astype(jnp.bfloat16)              # (HID, 4H)

    grid_spec = pltpu.PrefetchScalarGridSpec(
        num_scalar_prefetch=0,
        grid=(n_chunks,),
        in_specs=[
            pl.BlockSpec((t_chunk, B, 4 * HID), lambda c: (c, 0, 0)),  # gates_x chunk
            pl.BlockSpec((HID, 4 * HID), lambda c: (0, 0)),            # W_hh^T (resident)
        ],
        out_specs=pl.BlockSpec((B, HID), lambda c: (0, 0)),            # h_T (resident)
        scratch_shapes=[
            pltpu.VMEM((B, HID), jnp.float32),   # h state
            pltpu.VMEM((B, HID), jnp.float32),   # c state
        ],
    )

    h_T = pl.pallas_call(
        functools.partial(_lstm_recurrence_kernel, t_chunk=t_chunk),
        out_shape=jax.ShapeDtypeStruct((B, HID), jnp.float32),
        grid_spec=grid_spec,
        compiler_params=pltpu.CompilerParams(
            dimension_semantics=("arbitrary",),   # time recurrence is sequential
        ),
    )(gx, whh_t)

    # ---- Tiny MLP head + softmax, once, in plain XLA (f32).
    z1 = jnp.maximum(h_T @ w1.T + b1, 0.0)        # Linear(128->64) + ReLU
    z2 = z1 @ w2.T + b2                           # Linear(64->20)
    return jax.nn.softmax(z2, axis=1)             # Softmax(dim=1)


def _reference(x, w_ih, w_hh, b_ih, b_hh, w1, b1, w2, b2):
    """Pure-JAX f32 reference (lax.scan LSTM) for a sanity check."""
    T, B, _ = x.shape
    b = b_ih + b_hh

    def step(carry, x_t):
        h, c = carry
        gates = x_t @ w_ih.T + h @ w_hh.T + b
        i = jax.nn.sigmoid(gates[:, 0 * HID:1 * HID])
        f = jax.nn.sigmoid(gates[:, 1 * HID:2 * HID])
        g = jnp.tanh(gates[:, 2 * HID:3 * HID])
        o = jax.nn.sigmoid(gates[:, 3 * HID:4 * HID])
        c = f * c + i * g
        h = o * jnp.tanh(c)
        return (h, c), None

    h0 = jnp.zeros((B, HID), jnp.float32)
    c0 = jnp.zeros((B, HID), jnp.float32)
    (h_T, _), _ = jax.lax.scan(step, (h0, c0), x)
    z = jnp.maximum(h_T @ w1.T + b1, 0.0)
    z = z @ w2.T + b2
    return jax.nn.softmax(z, axis=1)


if __name__ == "__main__":
    T, B = 16, 8   # small seq / batch (B multiple of 8 for TPU sublanes)

    key = jax.random.PRNGKey(0)
    ks = jax.random.split(key, 10)
    scale = 0.05
    x = jax.random.normal(ks[0], (T, B, IN_DIM), jnp.float32)

    w_ih = scale * jax.random.normal(ks[1], (4 * HID, IN_DIM), jnp.float32)
    w_hh = scale * jax.random.normal(ks[2], (4 * HID, HID), jnp.float32)
    b_ih = scale * jax.random.normal(ks[3], (4 * HID,), jnp.float32)
    b_hh = scale * jax.random.normal(ks[4], (4 * HID,), jnp.float32)
    w1 = scale * jax.random.normal(ks[5], (FC1, HID), jnp.float32)
    b1 = scale * jax.random.normal(ks[6], (FC1,), jnp.float32)
    w2 = scale * jax.random.normal(ks[7], (NUM_CLASSES, FC1), jnp.float32)
    b2 = scale * jax.random.normal(ks[8], (NUM_CLASSES,), jnp.float32)

    # t_chunk=8 -> grid=(2,) so the cross-chunk state carry is exercised.
    out = lstm_over_bert(x, w_ih, w_hh, b_ih, b_hh, w1, b1, w2, b2, t_chunk=8)
    out = jax.block_until_ready(out)

    ref = _reference(x, w_ih, w_hh, b_ih, b_hh, w1, b1, w2, b2)
    assert out.shape == (B, NUM_CLASSES)
    assert jnp.allclose(out, ref, atol=1e-2, rtol=1e-2), "mismatch vs reference"

    print("KERNEL_OK")
</pallas_src>

<mosaic_0001>
module attributes {stable_mosaic.version = 11 : i64} {
  func.func @_lstm_recurrence_kernel(%arg0: i32, %arg1: memref<8x8x512xbf16, #tpu.memory_space<vmem>>, %arg2: memref<128x512xbf16, #tpu.memory_space<vmem>>, %arg3: memref<8x128xf32, #tpu.memory_space<vmem>>, %arg4: memref<8x128xf32, #tpu.memory_space<vmem>>, %arg5: memref<8x128xf32, #tpu.memory_space<vmem>>) attributes {dimension_semantics = [#tpu.dimension_semantics<arbitrary>], iteration_bounds = array<i64: 2>, scalar_prefetch = 0 : i64, scratch_operands = 2 : i64, tpu.core_type = #tpu.core_type<tc>, window_params = [{transform_indices = @transform_0, window_bounds = array<i64: 8, 8, 512>}, {pipeline_mode = #tpu.pipeline_mode<synchronous>, transform_indices = @transform_1, window_bounds = array<i64: 128, 512>}, {pipeline_mode = #tpu.pipeline_mode<synchronous>, transform_indices = @transform_2, window_bounds = array<i64: 8, 128>}]} {
    %c0_i32 = arith.constant 0 : i32
    %0 = arith.cmpi eq, %arg0, %c0_i32 : i32
    %1 = arith.extui %0 : i1 to i32
    %c0_i32_0 = arith.constant 0 : i32
    %2 = arith.cmpi ne, %1, %c0_i32_0 : i32
    scf.if %2 {
      %cst_116 = arith.constant 0.000000e+00 : f32
      %295 = vector.broadcast %cst_116 : f32 to vector<8x128xf32>
      %c0_117 = arith.constant 0 : index
      %c0_118 = arith.constant 0 : index
      %296 = vector.load %arg4[%c0_117, %c0_118] : memref<8x128xf32, #tpu.memory_space<vmem>>, vector<8x128xf32>
      tpu.vector_store %arg4[%c0_117, %c0_118], %295 {strides = array<i32>} : memref<8x128xf32, #tpu.memory_space<vmem>>, vector<8x128xf32>,
      %cst_119 = arith.constant 0.000000e+00 : f32
      %297 = vector.broadcast %cst_119 : f32 to vector<8x128xf32>
      %c0_120 = arith.constant 0 : index
      %c0_121 = arith.constant 0 : index
      %298 = vector.load %arg5[%c0_120, %c0_121] : memref<8x128xf32, #tpu.memory_space<vmem>>, vector<8x128xf32>
      tpu.vector_store %arg5[%c0_120, %c0_121], %297 {strides = array<i32>} : memref<8x128xf32, #tpu.memory_space<vmem>>, vector<8x128xf32>,
    } else {
    }
    %c0 = arith.constant 0 : index
    %c0_1 = arith.constant 0 : index
    %3 = vector.load %arg2[%c0, %c0_1] : memref<128x512xbf16, #tpu.memory_space<vmem>>, vector<128x512xbf16>
    %c0_i32_2 = arith.constant 0 : i32
    %4 = arith.index_cast %c0_i32_2 : i32 to index
    %c0_3 = arith.constant 0 : index
    %c0_4 = arith.constant 0 : index
    %5 = vector.load %arg1[%4, %c0_3, %c0_4] : memref<8x8x512xbf16, #tpu.memory_space<vmem>>, vector<1x8x512xbf16>
    %6 = vector.shape_cast %5 : vector<1x8x512xbf16> to vector<8x512xbf16>
    %7 = arith.extf %6 : vector<8x512xbf16> to vector<8x512xf32>
    %c0_5 = arith.constant 0 : index
    %c0_6 = arith.constant 0 : index
    %8 = vector.load %arg4[%c0_5, %c0_6] : memref<8x128xf32, #tpu.memory_space<vmem>>, vector<8x128xf32>
    %9 = arith.truncf %8 : vector<8x128xf32> to vector<8x128xbf16>
    %cst = arith.constant dense<0.000000e+00> : vector<8x512xf32>
    %10 = tpu.matmul %9, %3, %cst {dimension_numbers = #tpu.dot_dimension_numbers<[1], [0], [0], [1], [0, 0, 1, 1], [], []>} : vector<8x128xbf16>, vector<128x512xbf16>, vector<8x512xf32> -> vector<8x512xf32>
    %11 = arith.addf %7, %10 : vector<8x512xf32>
    %12 = vector.extract_strided_slice %11 {offsets = [0, 0], sizes = [8, 128], strides = [1, 1]} : vector<8x512xf32> to vector<8x128xf32>
    %13 = arith.negf %12 : vector<8x128xf32>
    %14 = math.exp %13 : vector<8x128xf32>
    %cst_7 = arith.constant 1.000000e+00 : f32
    %15 = vector.broadcast %cst_7 : f32 to vector<8x128xf32>
    %16 = arith.addf %15, %14 : vector<8x128xf32>
    %17 = arith.divf %15, %16 : vector<8x128xf32>
    %18 = vector.extract_strided_slice %11 {offsets = [0, 128], sizes = [8, 128], strides = [1, 1]} : vector<8x512xf32> to vector<8x128xf32>
    %19 = arith.negf %18 : vector<8x128xf32>
    %20 = math.exp %19 : vector<8x128xf32>
    %cst_8 = arith.constant 1.000000e+00 : f32
    %21 = vector.broadcast %cst_8 : f32 to vector<8x128xf32>
    %22 = arith.addf %21, %20 : vector<8x128xf32>
    %23 = arith.divf %21, %22 : vector<8x128xf32>
    %24 = vector.extract_strided_slice %11 {offsets = [0, 256], sizes = [8, 128], strides = [1, 1]} : vector<8x512xf32> to vector<8x128xf32>
    %25 = math.tanh %24 : vector<8x128xf32>
    %26 = vector.extract_strided_slice %11 {offsets = [0, 384], sizes = [8, 128], strides = [1, 1]} : vector<8x512xf32> to vector<8x128xf32>
    %27 = arith.negf %26 : vector<8x128xf32>
    %28 = math.exp %27 : vector<8x128xf32>
    %cst_9 = arith.constant 1.000000e+00 : f32
    %29 = vector.broadcast %cst_9 : f32 to vector<8x128xf32>
    %30 = arith.addf %29, %28 : vector<8x128xf32>
    %31 = arith.divf %29, %30 : vector<8x128xf32>
    %c0_10 = arith.constant 0 : index
    %c0_11 = arith.constant 0 : index
    %32 = vector.load %arg5[%c0_10, %c0_11] : memref<8x128xf32, #tpu.memory_space<vmem>>, vector<8x128xf32>
    %33 = arith.mulf %23, %32 : vector<8x128xf32>
    %34 = arith.mulf %17, %25 : vector<8x128xf32>
    %35 = arith.addf %33, %34 : vector<8x128xf32>
    %c0_12 = arith.constant 0 : index
    %c0_13 = arith.constant 0 : index
    %36 = vector.load %arg5[%c0_12, %c0_13] : memref<8x128xf32, #tpu.memory_space<vmem>>, vector<8x128xf32>
    tpu.vector_store %arg5[%c0_12, %c0_13], %35 {strides = array<i32>} : memref<8x128xf32, #tpu.memory_space<vmem>>, vector<8x128xf32>,
    %37 = math.tanh %35 : vector<8x128xf32>
    %38 = arith.mulf %31, %37 : vector<8x128xf32>
    %c0_14 = arith.constant 0 : index
    %c0_15 = arith.constant 0 : index
    %39 = vector.load %arg4[%c0_14, %c0_15] : memref<8x128xf32, #tpu.memory_space<vmem>>, vector<8x128xf32>
    tpu.vector_store %arg4[%c0_14, %c0_15], %38 {strides = array<i32>} : memref<8x128xf32, #tpu.memory_space<vmem>>, vector<8x128xf32>,
    %c1_i32 = arith.constant 1 : i32
    %40 = arith.index_cast %c1_i32 : i32 to index
    %c0_16 = arith.constant 0 : index
    %c0_17 = arith.constant 0 : index
    %41 = vector.load %arg1[%40, %c0_16, %c0_17] : memref<8x8x512xbf16, #tpu.memory_space<vmem>>, vector<1x8x512xbf16>
    %42 = vector.shape_cast %41 : vector<1x8x512xbf16> to vector<8x512xbf16>
    %43 = arith.extf %42 : vector<8x512xbf16> to vector<8x512xf32>
    %c0_18 = arith.constant 0 : index
    %c0_19 = arith.constant 0 : index
    %44 = vector.load %arg4[%c0_18, %c0_19] : memref<8x128xf32, #tpu.memory_space<vmem>>, vector<8x128xf32>
    %45 = arith.truncf %44 : vector<8x128xf32> to vector<8x128xbf16>
    %cst_20 = arith.constant dense<0.000000e+00> : vector<8x512xf32>
    %46 = tpu.matmul %45, %3, %cst_20 {dimension_numbers = #tpu.dot_dimension_numbers<[1], [0], [0], [1], [0, 0, 1, 1], [], []>} : vector<8x128xbf16>, vector<128x512xbf16>, vector<8x512xf32> -> vector<8x512xf32>
    %47 = arith.addf %43, %46 : vector<8x512xf32>
    %48 = vector.extract_strided_slice %47 {offsets = [0, 0], sizes = [8, 128], strides = [1, 1]} : vector<8x512xf32> to vector<8x128xf32>
    %49 = arith.negf %48 : vector<8x128xf32>
    %50 = math.exp %49 : vector<8x128xf32>
    %cst_21 = arith.constant 1.000000e+00 : f32
    %51 = vector.broadcast %cst_21 : f32 to vector<8x128xf32>
    %52 = arith.addf %51, %50 : vector<8x128xf32>
    %53 = arith.divf %51, %52 : vector<8x128xf32>
    %54 = vector.extract_strided_slice %47 {offsets = [0, 128], sizes = [8, 128], strides = [1, 1]} : vector<8x512xf32> to vector<8x128xf32>
    %55 = arith.negf %54 : vector<8x128xf32>
    %56 = math.exp %55 : vector<8x128xf32>
    %cst_22 = arith.constant 1.000000e+00 : f32
    %57 = vector.broadcast %cst_22 : f32 to vector<8x128xf32>
    %58 = arith.addf %57, %56 : vector<8x128xf32>
    %59 = arith.divf %57, %58 : vector<8x128xf32>
    %60 = vector.extract_strided_slice %47 {offsets = [0, 256], sizes = [8, 128], strides = [1, 1]} : vector<8x512xf32> to vector<8x128xf32>
    %61 = math.tanh %60 : vector<8x128xf32>
    %62 = vector.extract_strided_slice %47 {offsets = [0, 384], sizes = [8, 128], strides = [1, 1]} : vector<8x512xf32> to vector<8x128xf32>
    %63 = arith.negf %62 : vector<8x128xf32>
    %64 = math.exp %63 : vector<8x128xf32>
    %cst_23 = arith.constant 1.000000e+00 : f32
    %65 = vector.broadcast %cst_23 : f32 to vector<8x128xf32>
    %66 = arith.addf %65, %64 : vector<8x128xf32>
    %67 = arith.divf %65, %66 : vector<8x128xf32>
    %c0_24 = arith.constant 0 : index
    %c0_25 = arith.constant 0 : index
    %68 = vector.load %arg5[%c0_24, %c0_25] : memref<8x128xf32, #tpu.memory_space<vmem>>, vector<8x128xf32>
    %69 = arith.mulf %59, %68 : vector<8x128xf32>
    %70 = arith.mulf %53, %61 : vector<8x128xf32>
    %71 = arith.addf %69, %70 : vector<8x128xf32>
    %c0_26 = arith.constant 0 : index
    %c0_27 = arith.constant 0 : index
    %72 = vector.load %arg5[%c0_26, %c0_27] : memref<8x128xf32, #tpu.memory_space<vmem>>, vector<8x128xf32>
    tpu.vector_store %arg5[%c0_26, %c0_27], %71 {strides = array<i32>} : memref<8x128xf32, #tpu.memory_space<vmem>>, vector<8x128xf32>,
    %73 = math.tanh %71 : vector<8x128xf32>
    %74 = arith.mulf %67, %73 : vector<8x128xf32>
    %c0_28 = arith.constant 0 : index
    %c0_29 = arith.constant 0 : index
    %75 = vector.load %arg4[%c0_28, %c0_29] : memref<8x128xf32, #tpu.memory_space<vmem>>, vector<8x128xf32>
    tpu.vector_store %arg4[%c0_28, %c0_29], %74 {strides = array<i32>} : memref<8x128xf32, #tpu.memory_space<vmem>>, vector<8x128xf32>,
    %c2_i32 = arith.constant 2 : i32
    %76 = arith.index_cast %c2_i32 : i32 to index
    %c0_30 = arith.constant 0 : index
    %c0_31 = arith.constant 0 : index
    %77 = vector.load %arg1[%76, %c0_30, %c0_31] : memref<8x8x512xbf16, #tpu.memory_space<vmem>>, vector<1x8x512xbf16>
    %78 = vector.shape_cast %77 : vector<1x8x512xbf16> to vector<8x512xbf16>
    %79 = arith.extf %78 : vector<8x512xbf16> to vector<8x512xf32>
    %c0_32 = arith.constant 0 : index
    %c0_33 = arith.constant 0 : index
    %80 = vector.load %arg4[%c0_32, %c0_33] : memref<8x128xf32, #tpu.memory_space<vmem>>, vector<8x128xf32>
    %81 = arith.truncf %80 : vector<8x128xf32> to vector<8x128xbf16>
    %cst_34 = arith.constant dense<0.000000e+00> : vector<8x512xf32>
    %82 = tpu.matmul %81, %3, %cst_34 {dimension_numbers = #tpu.dot_dimension_numbers<[1], [0], [0], [1], [0, 0, 1, 1], [], []>} : vector<8x128xbf16>, vector<128x512xbf16>, vector<8x512xf32> -> vector<8x512xf32>
    %83 = arith.addf %79, %82 : vector<8x512xf32>
    %84 = vector.extract_strided_slice %83 {offsets = [0, 0], sizes = [8, 128], strides = [1, 1]} : vector<8x512xf32> to vector<8x128xf32>
    %85 = arith.negf %84 : vector<8x128xf32>
    %86 = math.exp %85 : vector<8x128xf32>
    %cst_35 = arith.constant 1.000000e+00 : f32
    %87 = vector.broadcast %cst_35 : f32 to vector<8x128xf32>
    %88 = arith.addf %87, %86 : vector<8x128xf32>
    %89 = arith.divf %87, %88 : vector<8x128xf32>
    %90 = vector.extract_strided_slice %83 {offsets = [0, 128], sizes = [8, 128], strides = [1, 1]} : vector<8x512xf32> to vector<8x128xf32>
    %91 = arith.negf %90 : vector<8x128xf32>
    %92 = math.exp %91 : vector<8x128xf32>
    %cst_36 = arith.constant 1.000000e+00 : f32
    %93 = vector.broadcast %cst_36 : f32 to vector<8x128xf32>
    %94 = arith.addf %93, %92 : vector<8x128xf32>
    %95 = arith.divf %93, %94 : vector<8x128xf32>
    %96 = vector.extract_strided_slice %83 {offsets = [0, 256], sizes = [8, 128], strides = [1, 1]} : vector<8x512xf32> to vector<8x128xf32>
    %97 = math.tanh %96 : vector<8x128xf32>
    %98 = vector.extract_strided_slice %83 {offsets = [0, 384], sizes = [8, 128], strides = [1, 1]} : vector<8x512xf32> to vector<8x128xf32>
    %99 = arith.negf %98 : vector<8x128xf32>
    %100 = math.exp %99 : vector<8x128xf32>
    %cst_37 = arith.constant 1.000000e+00 : f32
    %101 = vector.broadcast %cst_37 : f32 to vector<8x128xf32>
    %102 = arith.addf %101, %100 : vector<8x128xf32>
    %103 = arith.divf %101, %102 : vector<8x128xf32>
    %c0_38 = arith.constant 0 : index
    %c0_39 = arith.constant 0 : index
    %104 = vector.load %arg5[%c0_38, %c0_39] : memref<8x128xf32, #tpu.memory_space<vmem>>, vector<8x128xf32>
    %105 = arith.mulf %95, %104 : vector<8x128xf32>
    %106 = arith.mulf %89, %97 : vector<8x128xf32>
    %107 = arith.addf %105, %106 : vector<8x128xf32>
    %c0_40 = arith.constant 0 : index
    %c0_41 = arith.constant 0 : index
    %108 = vector.load %arg5[%c0_40, %c0_41] : memref<8x128xf32, #tpu.memory_space<vmem>>, vector<8x128xf32>
    tpu.vector_store %arg5[%c0_40, %c0_41], %107 {strides = array<i32>} : memref<8x128xf32, #tpu.memory_space<vmem>>, vector<8x128xf32>,
    %109 = math.tanh %107 : vector<8x128xf32>
    %110 = arith.mulf %103, %109 : vector<8x128xf32>
    %c0_42 = arith.constant 0 : index
    %c0_43 = arith.constant 0 : index
    %111 = vector.load %arg4[%c0_42, %c0_43] : memref<8x128xf32, #tpu.memory_space<vmem>>, vector<8x128xf32>
    tpu.vector_store %arg4[%c0_42, %c0_43], %110 {strides = array<i32>} : memref<8x128xf32, #tpu.memory_space<vmem>>, vector<8x128xf32>,
    %c3_i32 = arith.constant 3 : i32
    %112 = arith.index_cast %c3_i32 : i32 to index
    %c0_44 = arith.constant 0 : index
    %c0_45 = arith.constant 0 : index
    %113 = vector.load %arg1[%112, %c0_44, %c0_45] : memref<8x8x512xbf16, #tpu.memory_space<vmem>>, vector<1x8x512xbf16>
    %114 = vector.shape_cast %113 : vector<1x8x512xbf16> to vector<8x512xbf16>
    %115 = arith.extf %114 : vector<8x512xbf16> to vector<8x512xf32>
    %c0_46 = arith.constant 0 : index
    %c0_47 = arith.constant 0 : index
    %116 = vector.load %arg4[%c0_46, %c0_47] : memref<8x128xf32, #tpu.memory_space<vmem>>, vector<8x128xf32>
    %117 = arith.truncf %116 : vector<8x128xf32> to vector<8x128xbf16>
    %cst_48 = arith.constant dense<0.000000e+00> : vector<8x512xf32>
    %118 = tpu.matmul %117, %3, %cst_48 {dimension_numbers = #tpu.dot_dimension_numbers<[1], [0], [0], [1], [0, 0, 1, 1], [], []>} : vector<8x128xbf16>, vector<128x512xbf16>, vector<8x512xf32> -> vector<8x512xf32>
    %119 = arith.addf %115, %118 : vector<8x512xf32>
    %120 = vector.extract_strided_slice %119 {offsets = [0, 0], sizes = [8, 128], strides = [1, 1]} : vector<8x512xf32> to vector<8x128xf32>
    %121 = arith.negf %120 : vector<8x128xf32>
    %122 = math.exp %121 : vector<8x128xf32>
    %cst_49 = arith.constant 1.000000e+00 : f32
    %123 = vector.broadcast %cst_49 : f32 to vector<8x128xf32>
    %124 = arith.addf %123, %122 : vector<8x128xf32>
    %125 = arith.divf %123, %124 : vector<8x128xf32>
    %126 = vector.extract_strided_slice %119 {offsets = [0, 128], sizes = [8, 128], strides = [1, 1]} : vector<8x512xf32> to vector<8x128xf32>
    %127 = arith.negf %126 : vector<8x128xf32>
    %128 = math.exp %127 : vector<8x128xf32>
    %cst_50 = arith.constant 1.000000e+00 : f32
    %129 = vector.broadcast %cst_50 : f32 to vector<8x128xf32>
    %130 = arith.addf %129, %128 : vector<8x128xf32>
    %131 = arith.divf %129, %130 : vector<8x128xf32>
    %132 = vector.extract_strided_slice %119 {offsets = [0, 256], sizes = [8, 128], strides = [1, 1]} : vector<8x512xf32> to vector<8x128xf32>
    %133 = math.tanh %132 : vector<8x128xf32>
    %134 = vector.extract_strided_slice %119 {offsets = [0, 384], sizes = [8, 128], strides = [1, 1]} : vector<8x512xf32> to vector<8x128xf32>
    %135 = arith.negf %134 : vector<8x128xf32>
    %136 = math.exp %135 : vector<8x128xf32>
    %cst_51 = arith.constant 1.000000e+00 : f32
    %137 = vector.broadcast %cst_51 : f32 to vector<8x128xf32>
    %138 = arith.addf %137, %136 : vector<8x128xf32>
    %139 = arith.divf %137, %138 : vector<8x128xf32>
    %c0_52 = arith.constant 0 : index
    %c0_53 = arith.constant 0 : index
    %140 = vector.load %arg5[%c0_52, %c0_53] : memref<8x128xf32, #tpu.memory_space<vmem>>, vector<8x128xf32>
    %141 = arith.mulf %131, %140 : vector<8x128xf32>
    %142 = arith.mulf %125, %133 : vector<8x128xf32>
    %143 = arith.addf %141, %142 : vector<8x128xf32>
    %c0_54 = arith.constant 0 : index
    %c0_55 = arith.constant 0 : index
    %144 = vector.load %arg5[%c0_54, %c0_55] : memref<8x128xf32, #tpu.memory_space<vmem>>, vector<8x128xf32>
    tpu.vector_store %arg5[%c0_54, %c0_55], %143 {strides = array<i32>} : memref<8x128xf32, #tpu.memory_space<vmem>>, vector<8x128xf32>,
    %145 = math.tanh %143 : vector<8x128xf32>
    %146 = arith.mulf %139, %145 : vector<8x128xf32>
    %c0_56 = arith.constant 0 : index
    %c0_57 = arith.constant 0 : index
    %147 = vector.load %arg4[%c0_56, %c0_57] : memref<8x128xf32, #tpu.memory_space<vmem>>, vector<8x128xf32>
    tpu.vector_store %arg4[%c0_56, %c0_57], %146 {strides = array<i32>} : memref<8x128xf32, #tpu.memory_space<vmem>>, vector<8x128xf32>,
    %c4_i32 = arith.constant 4 : i32
    %148 = arith.index_cast %c4_i32 : i32 to index
    %c0_58 = arith.constant 0 : index
    %c0_59 = arith.constant 0 : index
    %149 = vector.load %arg1[%148, %c0_58, %c0_59] : memref<8x8x512xbf16, #tpu.memory_space<vmem>>, vector<1x8x512xbf16>
    %150 = vector.shape_cast %149 : vector<1x8x512xbf16> to vector<8x512xbf16>
    %151 = arith.extf %150 : vector<8x512xbf16> to vector<8x512xf32>
    %c0_60 = arith.constant 0 : index
    %c0_61 = arith.constant 0 : index
    %152 = vector.load %arg4[%c0_60, %c0_61] : memref<8x128xf32, #tpu.memory_space<vmem>>, vector<8x128xf32>
    %153 = arith.truncf %152 : vector<8x128xf32> to vector<8x128xbf16>
    %cst_62 = arith.constant dense<0.000000e+00> : vector<8x512xf32>
    %154 = tpu.matmul %153, %3, %cst_62 {dimension_numbers = #tpu.dot_dimension_numbers<[1], [0], [0], [1], [0, 0, 1, 1], [], []>} : vector<8x128xbf16>, vector<128x512xbf16>, vector<8x512xf32> -> vector<8x512xf32>
    %155 = arith.addf %151, %154 : vector<8x512xf32>
    %156 = vector.extract_strided_slice %155 {offsets = [0, 0], sizes = [8, 128], strides = [1, 1]} : vector<8x512xf32> to vector<8x128xf32>
    %157 = arith.negf %156 : vector<8x128xf32>
    %158 = math.exp %157 : vector<8x128xf32>
    %cst_63 = arith.constant 1.000000e+00 : f32
    %159 = vector.broadcast %cst_63 : f32 to vector<8x128xf32>
    %160 = arith.addf %159, %158 : vector<8x128xf32>
    %161 = arith.divf %159, %160 : vector<8x128xf32>
    %162 = vector.extract_strided_slice %155 {offsets = [0, 128], sizes = [8, 128], strides = [1, 1]} : vector<8x512xf32> to vector<8x128xf32>
    %163 = arith.negf %162 : vector<8x128xf32>
    %164 = math.exp %163 : vector<8x128xf32>
    %cst_64 = arith.constant 1.000000e+00 : f32
    %165 = vector.broadcast %cst_64 : f32 to vector<8x128xf32>
    %166 = arith.addf %165, %164 : vector<8x128xf32>
    %167 = arith.divf %165, %166 : vector<8x128xf32>
    %168 = vector.extract_strided_slice %155 {offsets = [0, 256], sizes = [8, 128], strides = [1, 1]} : vector<8x512xf32> to vector<8x128xf32>
    %169 = math.tanh %168 : vector<8x128xf32>
    %170 = vector.extract_strided_slice %155 {offsets = [0, 384], sizes = [8, 128], strides = [1, 1]} : vector<8x512xf32> to vector<8x128xf32>
    %171 = arith.negf %170 : vector<8x128xf32>
    %172 = math.exp %171 : vector<8x128xf32>
    %cst_65 = arith.constant 1.000000e+00 : f32
    %173 = vector.broadcast %cst_65 : f32 to vector<8x128xf32>
    %174 = arith.addf %173, %172 : vector<8x128xf32>
    %175 = arith.divf %173, %174 : vector<8x128xf32>
    %c0_66 = arith.constant 0 : index
    %c0_67 = arith.constant 0 : index
    %176 = vector.load %arg5[%c0_66, %c0_67] : memref<8x128xf32, #tpu.memory_space<vmem>>, vector<8x128xf32>
    %177 = arith.mulf %167, %176 : vector<8x128xf32>
    %178 = arith.mulf %161, %169 : vector<8x128xf32>
    %179 = arith.addf %177, %178 : vector<8x128xf32>
    %c0_68 = arith.constant 0 : index
    %c0_69 = arith.constant 0 : index
    %180 = vector.load %arg5[%c0_68, %c0_69] : memref<8x128xf32, #tpu.memory_space<vmem>>, vector<8x128xf32>
    tpu.vector_store %arg5[%c0_68, %c0_69], %179 {strides = array<i32>} : memref<8x128xf32, #tpu.memory_space<vmem>>, vector<8x128xf32>,
    %181 = math.tanh %179 : vector<8x128xf32>
    %182 = arith.mulf %175, %181 : vector<8x128xf32>
    %c0_70 = arith.constant 0 : index
    %c0_71 = arith.constant 0 : index
    %183 = vector.load %arg4[%c0_70, %c0_71] : memref<8x128xf32, #tpu.memory_space<vmem>>, vector<8x128xf32>
    tpu.vector_store %arg4[%c0_70, %c0_71], %182 {strides = array<i32>} : memref<8x128xf32, #tpu.memory_space<vmem>>, vector<8x128xf32>,
    %c5_i32 = arith.constant 5 : i32
    %184 = arith.index_cast %c5_i32 : i32 to index
    %c0_72 = arith.constant 0 : index
    %c0_73 = arith.constant 0 : index
    %185 = vector.load %arg1[%184, %c0_72, %c0_73] : memref<8x8x512xbf16, #tpu.memory_space<vmem>>, vector<1x8x512xbf16>
    %186 = vector.shape_cast %185 : vector<1x8x512xbf16> to vector<8x512xbf16>
    %187 = arith.extf %186 : vector<8x512xbf16> to vector<8x512xf32>
    %c0_74 = arith.constant 0 : index
    %c0_75 = arith.constant 0 : index
    %188 = vector.load %arg4[%c0_74, %c0_75] : memref<8x128xf32, #tpu.memory_space<vmem>>, vector<8x128xf32>
    %189 = arith.truncf %188 : vector<8x128xf32> to vector<8x128xbf16>
    %cst_76 = arith.constant dense<0.000000e+00> : vector<8x512xf32>
    %190 = tpu.matmul %189, %3, %cst_76 {dimension_numbers = #tpu.dot_dimension_numbers<[1], [0], [0], [1], [0, 0, 1, 1], [], []>} : vector<8x128xbf16>, vector<128x512xbf16>, vector<8x512xf32> -> vector<8x512xf32>
    %191 = arith.addf %187, %190 : vector<8x512xf32>
    %192 = vector.extract_strided_slice %191 {offsets = [0, 0], sizes = [8, 128], strides = [1, 1]} : vector<8x512xf32> to vector<8x128xf32>
    %193 = arith.negf %192 : vector<8x128xf32>
    %194 = math.exp %193 : vector<8x128xf32>
    %cst_77 = arith.constant 1.000000e+00 : f32
    %195 = vector.broadcast %cst_77 : f32 to vector<8x128xf32>
    %196 = arith.addf %195, %194 : vector<8x128xf32>
    %197 = arith.divf %195, %196 : vector<8x128xf32>
    %198 = vector.extract_strided_slice %191 {offsets = [0, 128], sizes = [8, 128], strides = [1, 1]} : vector<8x512xf32> to vector<8x128xf32>
    %199 = arith.negf %198 : vector<8x128xf32>
    %200 = math.exp %199 : vector<8x128xf32>
    %cst_78 = arith.constant 1.000000e+00 : f32
    %201 = vector.broadcast %cst_78 : f32 to vector<8x128xf32>
    %202 = arith.addf %201, %200 : vector<8x128xf32>
    %203 = arith.divf %201, %202 : vector<8x128xf32>
    %204 = vector.extract_strided_slice %191 {offsets = [0, 256], sizes = [8, 128], strides = [1, 1]} : vector<8x512xf32> to vector<8x128xf32>
    %205 = math.tanh %204 : vector<8x128xf32>
    %206 = vector.extract_strided_slice %191 {offsets = [0, 384], sizes = [8, 128], strides = [1, 1]} : vector<8x512xf32> to vector<8x128xf32>
    %207 = arith.negf %206 : vector<8x128xf32>
    %208 = math.exp %207 : vector<8x128xf32>
    %cst_79 = arith.constant 1.000000e+00 : f32
    %209 = vector.broadcast %cst_79 : f32 to vector<8x128xf32>
    %210 = arith.addf %209, %208 : vector<8x128xf32>
    %211 = arith.divf %209, %210 : vector<8x128xf32>
    %c0_80 = arith.constant 0 : index
    %c0_81 = arith.constant 0 : index
    %212 = vector.load %arg5[%c0_80, %c0_81] : memref<8x128xf32, #tpu.memory_space<vmem>>, vector<8x128xf32>
    %213 = arith.mulf %203, %212 : vector<8x128xf32>
    %214 = arith.mulf %197, %205 : vector<8x128xf32>
    %215 = arith.addf %213, %214 : vector<8x128xf32>
    %c0_82 = arith.constant 0 : index
    %c0_83 = arith.constant 0 : index
    %216 = vector.load %arg5[%c0_82, %c0_83] : memref<8x128xf32, #tpu.memory_space<vmem>>, vector<8x128xf32>
    tpu.vector_store %arg5[%c0_82, %c0_83], %215 {strides = array<i32>} : memref<8x128xf32, #tpu.memory_space<vmem>>, vector<8x128xf32>,
    %217 = math.tanh %215 : vector<8x128xf32>
    %218 = arith.mulf %211, %217 : vector<8x128xf32>
    %c0_84 = arith.constant 0 : index
    %c0_85 = arith.constant 0 : index
    %219 = vector.load %arg4[%c0_84, %c0_85] : memref<8x128xf32, #tpu.memory_space<vmem>>, vector<8x128xf32>
    tpu.vector_store %arg4[%c0_84, %c0_85], %218 {strides = array<i32>} : memref<8x128xf32, #tpu.memory_space<vmem>>, vector<8x128xf32>,
    %c6_i32 = arith.constant 6 : i32
    %220 = arith.index_cast %c6_i32 : i32 to index
    %c0_86 = arith.constant 0 : index
    %c0_87 = arith.constant 0 : index
    %221 = vector.load %arg1[%220, %c0_86, %c0_87] : memref<8x8x512xbf16, #tpu.memory_space<vmem>>, vector<1x8x512xbf16>
    %222 = vector.shape_cast %221 : vector<1x8x512xbf16> to vector<8x512xbf16>
    %223 = arith.extf %222 : vector<8x512xbf16> to vector<8x512xf32>
    %c0_88 = arith.constant 0 : index
    %c0_89 = arith.constant 0 : index
    %224 = vector.load %arg4[%c0_88, %c0_89] : memref<8x128xf32, #tpu.memory_space<vmem>>, vector<8x128xf32>
    %225 = arith.truncf %224 : vector<8x128xf32> to vector<8x128xbf16>
    %cst_90 = arith.constant dense<0.000000e+00> : vector<8x512xf32>
    %226 = tpu.matmul %225, %3, %cst_90 {dimension_numbers = #tpu.dot_dimension_numbers<[1], [0], [0], [1], [0, 0, 1, 1], [], []>} : vector<8x128xbf16>, vector<128x512xbf16>, vector<8x512xf32> -> vector<8x512xf32>
    %227 = arith.addf %223, %226 : vector<8x512xf32>
    %228 = vector.extract_strided_slice %227 {offsets = [0, 0], sizes = [8, 128], strides = [1, 1]} : vector<8x512xf32> to vector<8x128xf32>
    %229 = arith.negf %228 : vector<8x128xf32>
    %230 = math.exp %229 : vector<8x128xf32>
    %cst_91 = arith.constant 1.000000e+00 : f32
    %231 = vector.broadcast %cst_91 : f32 to vector<8x128xf32>
    %232 = arith.addf %231, %230 : vector<8x128xf32>
    %233 = arith.divf %231, %232 : vector<8x128xf32>
    %234 = vector.extract_strided_slice %227 {offsets = [0, 128], sizes = [8, 128], strides = [1, 1]} : vector<8x512xf32> to vector<8x128xf32>
    %235 = arith.negf %234 : vector<8x128xf32>
    %236 = math.exp %235 : vector<8x128xf32>
    %cst_92 = arith.constant 1.000000e+00 : f32
    %237 = vector.broadcast %cst_92 : f32 to vector<8x128xf32>
    %238 = arith.addf %237, %236 : vector<8x128xf32>
    %239 = arith.divf %237, %238 : vector<8x128xf32>
    %240 = vector.extract_strided_slice %227 {offsets = [0, 256], sizes = [8, 128], strides = [1, 1]} : vector<8x512xf32> to vector<8x128xf32>
    %241 = math.tanh %240 : vector<8x128xf32>
    %242 = vector.extract_strided_slice %227 {offsets = [0, 384], sizes = [8, 128], strides = [1, 1]} : vector<8x512xf32> to vector<8x128xf32>
    %243 = arith.negf %242 : vector<8x128xf32>
    %244 = math.exp %243 : vector<8x128xf32>
    %cst_93 = arith.constant 1.000000e+00 : f32
    %245 = vector.broadcast %cst_93 : f32 to vector<8x128xf32>
    %246 = arith.addf %245, %244 : vector<8x128xf32>
    %247 = arith.divf %245, %246 : vector<8x128xf32>
    %c0_94 = arith.constant 0 : index
    %c0_95 = arith.constant 0 : index
    %248 = vector.load %arg5[%c0_94, %c0_95] : memref<8x128xf32, #tpu.memory_space<vmem>>, vector<8x128xf32>
    %249 = arith.mulf %239, %248 : vector<8x128xf32>
    %250 = arith.mulf %233, %241 : vector<8x128xf32>
    %251 = arith.addf %249, %250 : vector<8x128xf32>
    %c0_96 = arith.constant 0 : index
    %c0_97 = arith.constant 0 : index
    %252 = vector.load %arg5[%c0_96, %c0_97] : memref<8x128xf32, #tpu.memory_space<vmem>>, vector<8x128xf32>
    tpu.vector_store %arg5[%c0_96, %c0_97], %251 {strides = array<i32>} : memref<8x128xf32, #tpu.memory_space<vmem>>, vector<8x128xf32>,
    %253 = math.tanh %251 : vector<8x128xf32>
    %254 = arith.mulf %247, %253 : vector<8x128xf32>
    %c0_98 = arith.constant 0 : index
    %c0_99 = arith.constant 0 : index
    %255 = vector.load %arg4[%c0_98, %c0_99] : memref<8x128xf32, #tpu.memory_space<vmem>>, vector<8x128xf32>
    tpu.vector_store %arg4[%c0_98, %c0_99], %254 {strides = array<i32>} : memref<8x128xf32, #tpu.memory_space<vmem>>, vector<8x128xf32>,
    %c7_i32 = arith.constant 7 : i32
    %256 = arith.index_cast %c7_i32 : i32 to index
    %c0_100 = arith.constant 0 : index
    %c0_101 = arith.constant 0 : index
    %257 = vector.load %arg1[%256, %c0_100, %c0_101] : memref<8x8x512xbf16, #tpu.memory_space<vmem>>, vector<1x8x512xbf16>
    %258 = vector.shape_cast %257 : vector<1x8x512xbf16> to vector<8x512xbf16>
    %259 = arith.extf %258 : vector<8x512xbf16> to vector<8x512xf32>
    %c0_102 = arith.constant 0 : index
    %c0_103 = arith.constant 0 : index
    %260 = vector.load %arg4[%c0_102, %c0_103] : memref<8x128xf32, #tpu.memory_space<vmem>>, vector<8x128xf32>
    %261 = arith.truncf %260 : vector<8x128xf32> to vector<8x128xbf16>
    %cst_104 = arith.constant dense<0.000000e+00> : vector<8x512xf32>
    %262 = tpu.matmul %261, %3, %cst_104 {dimension_numbers = #tpu.dot_dimension_numbers<[1], [0], [0], [1], [0, 0, 1, 1], [], []>} : vector<8x128xbf16>, vector<128x512xbf16>, vector<8x512xf32> -> vector<8x512xf32>
    %263 = arith.addf %259, %262 : vector<8x512xf32>
    %264 = vector.extract_strided_slice %263 {offsets = [0, 0], sizes = [8, 128], strides = [1, 1]} : vector<8x512xf32> to vector<8x128xf32>
    %265 = arith.negf %264 : vector<8x128xf32>
    %266 = math.exp %265 : vector<8x128xf32>
    %cst_105 = arith.constant 1.000000e+00 : f32
    %267 = vector.broadcast %cst_105 : f32 to vector<8x128xf32>
    %268 = arith.addf %267, %266 : vector<8x128xf32>
    %269 = arith.divf %267, %268 : vector<8x128xf32>
    %270 = vector.extract_strided_slice %263 {offsets = [0, 128], sizes = [8, 128], strides = [1, 1]} : vector<8x512xf32> to vector<8x128xf32>
    %271 = arith.negf %270 : vector<8x128xf32>
    %272 = math.exp %271 : vector<8x128xf32>
    %cst_106 = arith.constant 1.000000e+00 : f32
    %273 = vector.broadcast %cst_106 : f32 to vector<8x128xf32>
    %274 = arith.addf %273, %272 : vector<8x128xf32>
    %275 = arith.divf %273, %274 : vector<8x128xf32>
    %276 = vector.extract_strided_slice %263 {offsets = [0, 256], sizes = [8, 128], strides = [1, 1]} : vector<8x512xf32> to vector<8x128xf32>
    %277 = math.tanh %276 : vector<8x128xf32>
    %278 = vector.extract_strided_slice %263 {offsets = [0, 384], sizes = [8, 128], strides = [1, 1]} : vector<8x512xf32> to vector<8x128xf32>
    %279 = arith.negf %278 : vector<8x128xf32>
    %280 = math.exp %279 : vector<8x128xf32>
    %cst_107 = arith.constant 1.000000e+00 : f32
    %281 = vector.broadcast %cst_107 : f32 to vector<8x128xf32>
    %282 = arith.addf %281, %280 : vector<8x128xf32>
    %283 = arith.divf %281, %282 : vector<8x128xf32>
    %c0_108 = arith.constant 0 : index
    %c0_109 = arith.constant 0 : index
    %284 = vector.load %arg5[%c0_108, %c0_109] : memref<8x128xf32, #tpu.memory_space<vmem>>, vector<8x128xf32>
    %285 = arith.mulf %275, %284 : vector<8x128xf32>
    %286 = arith.mulf %269, %277 : vector<8x128xf32>
    %287 = arith.addf %285, %286 : vector<8x128xf32>
    %c0_110 = arith.constant 0 : index
    %c0_111 = arith.constant 0 : index
    %288 = vector.load %arg5[%c0_110, %c0_111] : memref<8x128xf32, #tpu.memory_space<vmem>>, vector<8x128xf32>
    tpu.vector_store %arg5[%c0_110, %c0_111], %287 {strides = array<i32>} : memref<8x128xf32, #tpu.memory_space<vmem>>, vector<8x128xf32>,
    %289 = math.tanh %287 : vector<8x128xf32>
    %290 = arith.mulf %283, %289 : vector<8x128xf32>
    %c0_112 = arith.constant 0 : index
    %c0_113 = arith.constant 0 : index
    %291 = vector.load %arg4[%c0_112, %c0_113] : memref<8x128xf32, #tpu.memory_space<vmem>>, vector<8x128xf32>
    tpu.vector_store %arg4[%c0_112, %c0_113], %290 {strides = array<i32>} : memref<8x128xf32, #tpu.memory_space<vmem>>, vector<8x128xf32>,
    %c8_i32 = arith.constant 8 : i32
    %c1_i32_114 = arith.constant 1 : i32
    %292 = arith.cmpi eq, %arg0, %c1_i32_114 : i32
    %293 = arith.extui %292 : i1 to i32
    %c0_i32_115 = arith.constant 0 : i32
    %294 = arith.cmpi ne, %293, %c0_i32_115 : i32
    scf.if %294 {
      %c0_116 = arith.constant 0 : index
      %c0_117 = arith.constant 0 : index
      %295 = vector.load %arg4[%c0_116, %c0_117] : memref<8x128xf32, #tpu.memory_space<vmem>>, vector<8x128xf32>
      %c0_118 = arith.constant 0 : index
      %c0_119 = arith.constant 0 : index
      %296 = vector.load %arg3[%c0_118, %c0_119] : memref<8x128xf32, #tpu.memory_space<vmem>>, vector<8x128xf32>
      tpu.vector_store %arg3[%c0_118, %c0_119], %295 {strides = array<i32>} : memref<8x128xf32, #tpu.memory_space<vmem>>, vector<8x128xf32>,
    } else {
    }
    return
  }
  func.func @transform_0(%arg0: i32) -> (i32, i32, i32) {
    %c0_i32 = arith.constant 0 : i32
    %c0_i32_0 = arith.constant 0 : i32
    %c0_i32_1 = arith.constant 0 : i32
    return %arg0, %c0_i32, %c0_i32_0 : i32, i32, i32
  }
  func.func @transform_1(%arg0: i32) -> (i32, i32) {
    %c0_i32 = arith.constant 0 : i32
    %c0_i32_0 = arith.constant 0 : i32
    %c0_i32_1 = arith.constant 0 : i32
    return %c0_i32, %c0_i32_0 : i32, i32
  }
  func.func @transform_2(%arg0: i32) -> (i32, i32) {
    %c0_i32 = arith.constant 0 : i32
    %c0_i32_0 = arith.constant 0 : i32
    %c0_i32_1 = arith.constant 0 : i32
    return %c0_i32, %c0_i32_0 : i32, i32
  }
}

</mosaic_0001>

<llo_original>
// kernel: lstm_over_bert.1
$region0: #{lstm_over_bert.1}
  #allocation0 [shape = 'u32[]', space=smem, size = 0x4, offset = 0x4, fixed_abs, tag = 'smem constant byte address 0x4 - core index']
  #allocation1 [shape = 'u32[72,128]{1,0:T(1,128)}', space=vmem, size = 0x9000, scoped, tag = 'internal scratch']
  #allocation2 [shape = 'f32[8,128]{1,0:T(8,128)}', space=vmem, size = 0x1000, scoped, tag = 'scratch operand']
  #allocation3 [shape = 'f32[8,128]{1,0:T(8,128)}', space=vmem, size = 0x1000, scoped, tag = 'scratch operand']
  %s0 = inlined_call_operand.vmem [shape: bf16[16,8,512], index: 0, kind: input, shape index: {}]
  %s1 = inlined_call_operand.vmem [shape: bf16[128,512], index: 1, kind: input, shape index: {}]
  %s2 = inlined_call_operand.vmem [shape: f32[8,128], index: 2, kind: output, shape index: {}]
  %s3 = sld [smem:[#allocation0]]
  $region49: #{lstm_over_bert.1} parent=0
    _
  %s5 = ssub.s32 1, %s3
  %s6 = scalar_select 0, %s5, %s3
  loop: start=0, step=1, limit=4
  $region2: #{lstm_over_bert.1} parent=0 // loop_pre_header
    _
  $region3: #{lstm_over_bert.1} parent=0 // loop_header
    %s8 = sphi 0, %s12
    %p9 = scmp.ge.s32.totalorder %s8, 4
    %s18 = sphi 0, %s20
    %s21 = sphi 0, %s18
    %s22 = sphi 0, %s21
    %s38 = sphi 0, %s22
    %s42 = sphi 0, %s42
    %s44 = sphi 0, %s42
    %s45 = sphi 0, %s44
    %s59 = sphi 0, %s45
    %s63 = sphi 0, %s63
    %s65 = sphi 0, %s63
    %s66 = sphi 0, %s65
    %s80 = sphi 0, %s66
  $region4: #{lstm_over_bert.1} parent=0 // loop_header_branch
    %11 = sbr.rel (%p9) target = $region8
  $region5: #{lstm_over_bert.1} parent=0 // loop_body
    %s13 = ssub.s32 %s8, 1
    %s14 = ssub.s32 %s8, 2
    %s15 = sadd.s32 %s8, 1
    %s16 = ssub.s32 %s8, %s15
    %p17 = scmp.eq.s32.totalorder %s16, 0
    %s19 = sadd.s32 %s18, 1
    %s20 = scalar_select %p17, %s18, %s19
    %p23 = pneg %p17
    %p24 = scmp.eq.s32.totalorder %s8, 1
    %p25 = por %p23, %p24
    %p26 = scmp.ne.s32.totalorder %s18, %s21
    %p27 = scmp.eq.s32.totalorder %s8, 0
    %p28 = por %p26, %p27
    %p29 = scmp.ne.s32.totalorder %s18, %s21
    %p30 = scmp.eq.s32.totalorder %s13, 1
    %p31 = por %p29, %p30
    %p32 = scmp.ne.s32.totalorder %s21, %s22
    %p33 = scmp.eq.s32.totalorder %s13, 0
    %p34 = por %p32, %p33
    %p35 = scmp.ne.s32.totalorder %s21, %s22
    %p36 = scmp.eq.s32.totalorder %s14, 1
    %p37 = por %p35, %p36
    %p39 = scmp.ne.s32.totalorder %s22, %s38
    %p40 = scmp.eq.s32.totalorder %s14, 0
    %p41 = por %p39, %p40
    %s43 = sadd.s32 %s42, 1
    %p46 = scmp.eq.s32.totalorder %s8, 1
    %p47 = scmp.ne.s32.totalorder %s42, %s44
    %p48 = scmp.eq.s32.totalorder %s8, 0
    %p49 = por %p47, %p48
    %p50 = scmp.ne.s32.totalorder %s42, %s44
    %p51 = scmp.eq.s32.totalorder %s13, 1
    %p52 = por %p50, %p51
    %p53 = scmp.ne.s32.totalorder %s44, %s45
    %p54 = scmp.eq.s32.totalorder %s13, 0
    %p55 = por %p53, %p54
    %p56 = scmp.ne.s32.totalorder %s44, %s45
    %p57 = scmp.eq.s32.totalorder %s14, 1
    %p58 = por %p56, %p57
    %p60 = scmp.ne.s32.totalorder %s45, %s59
    %p61 = scmp.eq.s32.totalorder %s14, 0
    %p62 = por %p60, %p61
    %s64 = sadd.s32 %s63, 1
    %p67 = scmp.eq.s32.totalorder %s8, 1
    %p68 = scmp.ne.s32.totalorder %s63, %s65
    %p69 = scmp.eq.s32.totalorder %s8, 0
    %p70 = por %p68, %p69
    %p71 = scmp.ne.s32.totalorder %s63, %s65
    %p72 = scmp.eq.s32.totalorder %s13, 1
    %p73 = por %p71, %p72
    %p74 = scmp.ne.s32.totalorder %s65, %s66
    %p75 = scmp.eq.s32.totalorder %s13, 0
    %p76 = por %p74, %p75
    %p77 = scmp.ne.s32.totalorder %s65, %s66
    %p78 = scmp.eq.s32.totalorder %s14, 1
    %p79 = por %p77, %p78
    %p81 = scmp.ne.s32.totalorder %s66, %s80
    %p82 = scmp.eq.s32.totalorder %s14, 0
    %p83 = por %p81, %p82
    %p84 = scmp.le.s32.totalorder 1, %s8
    %p85 = scmp.lt.s32.totalorder %s8, 3
    %p86 = pnand %p84, %p85
    %p87 = pneg %p86
    // Predicated region
    $region9: #{lstm_over_bert.1} parent=5 // pred_check
      _
    $region10: #{lstm_over_bert.1} parent=5 // pred_check_branch
      %89 = sbr.rel (%p86) target = $region12
    $region11: #{lstm_over_bert.1} parent=5 // pred_region
      %s90 = ssub.s32 %s8, 1
      // Predicated region
      $region13: #{lstm_over_bert.1} parent=11 // pred_check
        %p91 = pneg %p55
      $region14: #{lstm_over_bert.1} parent=11 // pred_check_branch
        %93 = sbr.rel (%p91) target = $region16
      $region15: #{lstm_over_bert.1} parent=11 // pred_region
        _
      $region16: #{lstm_over_bert.1} parent=11 // pred_fallthru
        _
    $region12: #{lstm_over_bert.1} parent=5 // pred_fallthru
      _
    %p94 = scmp.lt.s32.totalorder %s8, 2
    // Predicated region
    $region17: #{lstm_over_bert.1} parent=5 // pred_check
      %p95 = pneg %p94
    $region18: #{lstm_over_bert.1} parent=5 // pred_check_branch
      %97 = sbr.rel (%p95) target = $region20
    $region19: #{lstm_over_bert.1} parent=5 // pred_region
      // Predicated region
      $region21: #{lstm_over_bert.1} parent=19 // pred_check
        %p98 = pneg %p28
      $region22: #{lstm_over_bert.1} parent=19 // pred_check_branch
        %100 = sbr.rel (%p98) target = $region24
      $region23: #{lstm_over_bert.1} parent=19 // pred_region
        %s101 = smul.u32 8, %s8
        %p102 = scmp.lt.s32.totalorder %s101, 15
        %s103 = scalar_select %p102, %s101, 15
        %s104 = smul.addr %s103, 4
        %s105 = smul.addr %s104, 4
        %s106 = scalar_lea.vmem %s0, %s105
        %s107 = smul.u32 8, %s8
      $region24: #{lstm_over_bert.1} parent=19 // pred_fallthru
        _
    $region20: #{lstm_over_bert.1} parent=5 // pred_fallthru
      _
    %p108 = scmp.le.s32.totalorder 1, %s8
    %p109 = scmp.lt.s32.totalorder %s8, 3
    %p110 = pnand %p108, %p109
    %p111 = pneg %p110
    // Predicated region
    $region25: #{lstm_over_bert.1} parent=5 // pred_check
      _
    $region26: #{lstm_over_bert.1} parent=5 // pred_check_branch
      %113 = sbr.rel (%p110) target = $region28
    $region27: #{lstm_over_bert.1} parent=5 // pred_region
      %s114 = ssub.s32 %s8, 1
      %s115 = smul.u32 8, %s13
      %p116 = scmp.lt.s32.totalorder %s115, 15
      %s117 = scalar_select %p116, %s115, 15
      %s118 = smul.addr %s117, 4
      %s119 = smul.addr %s118, 4
      %s120 = scalar_lea.vmem %s0, %s119
      %p121 = pneg %p34
      %p122 = pneg %p31
      %p123 = pneg %p55
      %p124 = pneg %p52
      %p125 = pneg %p76
      %p126 = pneg %p73
      %s127 = smul.u32 8, %s13
      %p128 = scmp.lt.s32.totalorder %s127, 15
      %s129 = scalar_select %p128, %s127, 15
      %s130 = smul.addr %s129, 4
      %s131 = smul.addr %s130, 4
      %s132 = scalar_lea.vmem %s0, %s131
      %s133 = smul.u32 8, %s13
      %p134 = scmp.eq.s32.totalorder %s13, 0
      // Predicated region
      $region29: #{lstm_over_bert.1} parent=27 // pred_check
        %p135 = pneg %p134
      $region30: #{lstm_over_bert.1} parent=27 // pred_check_branch
        %137 = sbr.rel (%p135) target = $region32
      $region31: #{lstm_over_bert.1} parent=27 // pred_region
        %138 = vst [vmem:[#allocation2] sm:$0xff] 0.0
        %139 = vst [vmem:[#allocation3] sm:$0xff] 0.0
      $region32: #{lstm_over_bert.1} parent=27 // pred_fallthru
        _
      %v140 = vld [vmem:[%s1] sm:$0xff]
      %v141 = vld [vmem:[%s1 + $0x8] sm:$0xff]
      %v142 = vld [vmem:[%s1 + $0x10] sm:$0xff]
      %v143 = vld [vmem:[%s1 + $0x18] sm:$0xff]
      %v144 = vld [vmem:[%s1 + $0x20] sm:$0xff]
      %v145 = vld [vmem:[%s1 + $0x28] sm:$0xff]
      %v146 = vld [vmem:[%s1 + $0x30] sm:$0xff]
      %v147 = vld [vmem:[%s1 + $0x38] sm:$0xff]
      %v148 = vld [vmem:[%s1 + $0x40] sm:$0xff]
      %v149 = vld [vmem:[%s1 + $0x48] sm:$0xff]
      %v150 = vld [vmem:[%s1 + $0x50] sm:$0xff]
      %v151 = vld [vmem:[%s1 + $0x58] sm:$0xff]
      %v152 = vld [vmem:[%s1 + $0x60] sm:$0xff]
      %v153 = vld [vmem:[%s1 + $0x68] sm:$0xff]
      %v154 = vld [vmem:[%s1 + $0x70] sm:$0xff]
      %v155 = vld [vmem:[%s1 + $0x78] sm:$0xff]
      %v156 = vld [vmem:[%s1 + $0x80] sm:$0xff]
      %v157 = vld [vmem:[%s1 + $0x88] sm:$0xff]
      %v158 = vld [vmem:[%s1 + $0x90] sm:$0xff]
      %v159 = vld [vmem:[%s1 + $0x98] sm:$0xff]
      %v160 = vld [vmem:[%s1 + $0xa0] sm:$0xff]
      %v161 = vld [vmem:[%s1 + $0xa8] sm:$0xff]
      %v162 = vld [vmem:[%s1 + $0xb0] sm:$0xff]
      %v163 = vld [vmem:[%s1 + $0xb8] sm:$0xff]
      %v164 = vld [vmem:[%s1 + $0xc0] sm:$0xff]
      %v165 = vld [vmem:[%s1 + $0xc8] sm:$0xff]
      %v166 = vld [vmem:[%s1 + $0xd0] sm:$0xff]
      %v167 = vld [vmem:[%s1 + $0xd8] sm:$0xff]
      %v168 = vld [vmem:[%s1 + $0xe0] sm:$0xff]
      %v169 = vld [vmem:[%s1 + $0xe8] sm:$0xff]
      %v170 = vld [vmem:[%s1 + $0xf0] sm:$0xff]
      %v171 = vld [vmem:[%s1 + $0xf8] sm:$0xff]
      %v172 = vld [vmem:[%s132] sm:$0xff]
      %v173 = vld [vmem:[%s132 + $0x8] sm:$0xff]
      %v174 = vunpack.c.l.bf16 %v172
      %v175 = vunpack.c.h.bf16 %v172
      %v176 = vunpack.c.l.bf16 %v173
      %v177 = vunpack.c.h.bf16 %v173
      %v178 = vld [vmem:[#allocation2] sm:$0xff]
      %v179 = vpack.c.bf16 %v178, %v178
      %v212 = vunpack.c.l.b16 %v140
      %v213 = vunpack.c.h.b16 %v140
      %v214 = vunpack.c.l.b16 %v141
      %v215 = vunpack.c.h.b16 %v141
      %v216 = vunpack.c.l.b16 %v142
      %v217 = vunpack.c.h.b16 %v142
      %v218 = vunpack.c.l.b16 %v143
      %v219 = vunpack.c.h.b16 %v143
      %v220 = vunpack.c.l.b16 %v144
      %v221 = vunpack.c.h.b16 %v144
      %v222 = vunpack.c.l.b16 %v145
      %v223 = vunpack.c.h.b16 %v145
      %v224 = vunpack.c.l.b16 %v146
      %v225 = vunpack.c.h.b16 %v146
      %v226 = vunpack.c.l.b16 %v147
      %v227 = vunpack.c.h.b16 %v147
      %v228 = vunpack.c.l.b16 %v148
      %v229 = vunpack.c.h.b16 %v148
      %v230 = vunpack.c.l.b16 %v149
      %v231 = vunpack.c.h.b16 %v149
      %v232 = vunpack.c.l.b16 %v150
      %v233 = vunpack.c.h.b16 %v150
      %v234 = vunpack.c.l.b16 %v151
      %v235 = vunpack.c.h.b16 %v151
      %v236 = vunpack.c.l.b16 %v152
      %v237 = vunpack.c.h.b16 %v152
      %v238 = vunpack.c.l.b16 %v153
      %v239 = vunpack.c.h.b16 %v153
      %v240 = vunpack.c.l.b16 %v154
      %v241 = vunpack.c.h.b16 %v154
      %v242 = vunpack.c.l.b16 %v155
      %v243 = vunpack.c.h.b16 %v155
      %v244 = vunpack.c.l.b16 %v156
      %v245 = vunpack.c.h.b16 %v156
      %v246 = vunpack.c.l.b16 %v157
      %v247 = vunpack.c.h.b16 %v157
      %v248 = vunpack.c.l.b16 %v158
      %v249 = vunpack.c.h.b16 %v158
      %v250 = vunpack.c.l.b16 %v159
      %v251 = vunpack.c.h.b16 %v159
      %v252 = vunpack.c.l.b16 %v160
      %v253 = vunpack.c.h.b16 %v160
      %v254 = vunpack.c.l.b16 %v161
      %v255 = vunpack.c.h.b16 %v161
      %v256 = vunpack.c.l.b16 %v162
      %v257 = vunpack.c.h.b16 %v162
      %v258 = vunpack.c.l.b16 %v163
      %v259 = vunpack.c.h.b16 %v163
      %v260 = vunpack.c.l.b16 %v164
      %v261 = vunpack.c.h.b16 %v164
      %v262 = vunpack.c.l.b16 %v165
      %v263 = vunpack.c.h.b16 %v165
      %v264 = vunpack.c.l.b16 %v166
      %v265 = vunpack.c.h.b16 %v166
      %v266 = vunpack.c.l.b16 %v167
      %v267 = vunpack.c.h.b16 %v167
      %v268 = vunpack.c.l.b16 %v168
      %v269 = vunpack.c.h.b16 %v168
      %v270 = vunpack.c.l.b16 %v169
      %v271 = vunpack.c.h.b16 %v169
      %v272 = vunpack.c.l.b16 %v170
      %v273 = vunpack.c.h.b16 %v170
      %v274 = vunpack.c.l.b16 %v171
      %v275 = vunpack.c.h.b16 %v171
      %v276 = vpack.c.b16 %v216, %v212
      %v277 = vpack.c.b16 %v217, %v213
      %v278 = vpack.c.b16 %v218, %v214
      %v279 = vpack.c.b16 %v219, %v215
      %v280 = vpack.c.b16 %v224, %v220
      %v281 = vpack.c.b16 %v225, %v221
      %v282 = vpack.c.b16 %v226, %v222
      %v283 = vpack.c.b16 %v227, %v223
      %v284 = vpack.c.b16 %v232, %v228
      %v285 = vpack.c.b16 %v233, %v229
      %v286 = vpack.c.b16 %v234, %v230
      %v287 = vpack.c.b16 %v235, %v231
      %v288 = vpack.c.b16 %v240, %v236
      %v289 = vpack.c.b16 %v241, %v237
      %v290 = vpack.c.b16 %v242, %v238
      %v291 = vpack.c.b16 %v243, %v239
      %v292 = vpack.c.b16 %v248, %v244
      %v293 = vpack.c.b16 %v249, %v245
      %v294 = vpack.c.b16 %v250, %v246
      %v295 = vpack.c.b16 %v251, %v247
      %v296 = vpack.c.b16 %v256, %v252
      %v297 = vpack.c.b16 %v257, %v253
      %v298 = vpack.c.b16 %v258, %v254
      %v299 = vpack.c.b16 %v259, %v255
      %v300 = vpack.c.b16 %v264, %v260
      %v301 = vpack.c.b16 %v265, %v261
      %v302 = vpack.c.b16 %v266, %v262
      %v303 = vpack.c.b16 %v267, %v263
      %v304 = vpack.c.b16 %v272, %v268
      %v305 = vpack.c.b16 %v273, %v269
      %v306 = vpack.c.b16 %v274, %v270
      %v307 = vpack.c.b16 %v275, %v271
      %340 = vmatpush.bf16.msra.mxu0 %v304
      %341 = vmatpush.bf16.msra.mxu0 %v300
      %342 = vmatpush.bf16.msra.mxu0 %v296
      %343 = vmatpush.bf16.msra.mxu0 %v292
      %344 = vmatpush.bf16.msra.mxu0 %v288
      %345 = vmatpush.bf16.msra.mxu0 %v284
      %346 = vmatpush.bf16.msra.mxu0 %v280
      %347 = vmatpush.bf16.msra.mxu0 %v276
      %348 = vmatmul.bf16.gmra.mxu0 %v179
      %v349 = vpop.f32.mrf.mxu0
      %v350 = vadd.f32 0.0, %v349
      %v351 = vpop.f32.mrf.mxu0
      %352 = vdwg.mxu0
      %353 = vmatpush.bf16.msra.mxu0 %v305
      %354 = vmatpush.bf16.msra.mxu0 %v301
      %355 = vmatpush.bf16.msra.mxu0 %v297
      %356 = vmatpush.bf16.msra.mxu0 %v293
      %357 = vmatpush.bf16.msra.mxu0 %v289
      %358 = vmatpush.bf16.msra.mxu0 %v285
      %359 = vmatpush.bf16.msra.mxu0 %v281
      %360 = vmatpush.bf16.msra.mxu0 %v277
      %361 = vmatmul.bf16.gmra.mxu0 %v179
      %v362 = vpop.f32.mrf.mxu0
      %v363 = vadd.f32 0.0, %v362
      %v364 = vpop.f32.mrf.mxu0
      %365 = vdwg.mxu0
      %366 = vmatpush.bf16.msra.mxu0 %v306
      %367 = vmatpush.bf16.msra.mxu0 %v302
      %368 = vmatpush.bf16.msra.mxu0 %v298
      %369 = vmatpush.bf16.msra.mxu0 %v294
      %370 = vmatpush.bf16.msra.mxu0 %v290
      %371 = vmatpush.bf16.msra.mxu0 %v286
      %372 = vmatpush.bf16.msra.mxu0 %v282
      %373 = vmatpush.bf16.msra.mxu0 %v278
      %374 = vmatmul.bf16.gmra.mxu0 %v179
      %v375 = vpop.f32.mrf.mxu0
      %v376 = vadd.f32 0.0, %v375
      %v377 = vpop.f32.mrf.mxu0
      %378 = vdwg.mxu0
      %379 = vmatpush.bf16.msra.mxu0 %v307
      %380 = vmatpush.bf16.msra.mxu0 %v303
      %381 = vmatpush.bf16.msra.mxu0 %v299
      %382 = vmatpush.bf16.msra.mxu0 %v295
      %383 = vmatpush.bf16.msra.mxu0 %v291
      %384 = vmatpush.bf16.msra.mxu0 %v287
      %385 = vmatpush.bf16.msra.mxu0 %v283
      %386 = vmatpush.bf16.msra.mxu0 %v279
      %387 = vmatmul.bf16.gmra.mxu0 %v179
      %v388 = vpop.f32.mrf.mxu0
      %v389 = vadd.f32 0.0, %v388
      %v390 = vpop.f32.mrf.mxu0
      %391 = vdwg.mxu0
      %v392 = vadd.f32 %v174, %v350
      %v393 = vadd.f32 %v175, %v363
      %v394 = vadd.f32 %v176, %v376
      %v395 = vadd.f32 %v177, %v389
      %v396 = vxor.u32 %v392, 2147483648
      %v397 = vmul.f32 %v396, 1.442695
      %v398 = vpow.pop %v397
      %v399 = vadd.f32 %v398, 1.0
      %v400 = vrcp.pop %v399
      %v401 = vmul.f32 %v399, %v400
      %v402 = vsub.f32 1.0, %v401
      %v403 = vmul.f32 %v400, %v402
      %v404 = vadd.f32 %v400, %v403
      %vm405 = vweird.f32 %v399
      %vm406 = vweird.f32 %v400
      %vm407 = vmor %vm405, %vm406
      %v408 = vsel %vm407, %v400, %v404
      %v409 = vand.u32 2147483647, %v399
      %vm410 = vcmp.eq.f32.partialorder %v409, 8.507059e+37
      %v411 = vand.u32 %v399, 2147483648
      %v412 = vor.u32 1.1754944e-38, %v411
      %v413 = vsel %vm410, %v412, %v408
      %v414 = vmul.f32 1.0, %v413
      %v415 = vxor.u32 %v393, 2147483648
      %v416 = vmul.f32 %v415, 1.442695
      %v417 = vpow.pop %v416
      %v418 = vadd.f32 %v417, 1.0
      %v419 = vrcp.pop %v418
      %v420 = vmul.f32 %v418, %v419
      %v421 = vsub.f32 1.0, %v420
      %v422 = vmul.f32 %v419, %v421
      %v423 = vadd.f32 %v419, %v422
      %vm424 = vweird.f32 %v418
      %vm425 = vweird.f32 %v419
      %vm426 = vmor %vm424, %vm425
      %v427 = vsel %vm426, %v419, %v423
      %v428 = vand.u32 2147483647, %v418
      %vm429 = vcmp.eq.f32.partialorder %v428, 8.507059e+37
      %v430 = vand.u32 %v418, 2147483648
      %v431 = vor.u32 1.1754944e-38, %v430
      %v432 = vsel %vm429, %v431, %v427
      %v433 = vmul.f32 1.0, %v432
      %v434 = vtanh.pop %v394
      %v435 = vxor.u32 %v395, 2147483648
      %v436 = vmul.f32 %v435, 1.442695
      %v437 = vpow.pop %v436
      %v438 = vadd.f32 %v437, 1.0
      %v439 = vrcp.pop %v438
      %v440 = vmul.f32 %v438, %v439
      %v441 = vsub.f32 1.0, %v440
      %v442 = vmul.f32 %v439, %v441
      %v443 = vadd.f32 %v439, %v442
      %vm444 = vweird.f32 %v438
      %vm445 = vweird.f32 %v439
      %vm446 = vmor %vm444, %vm445
      %v447 = vsel %vm446, %v439, %v443
      %v448 = vand.u32 2147483647, %v438
      %vm449 = vcmp.eq.f32.partialorder %v448, 8.507059e+37
      %v450 = vand.u32 %v438, 2147483648
      %v451 = vor.u32 1.1754944e-38, %v450
      %v452 = vsel %vm449, %v451, %v447
      %v453 = vmul.f32 1.0, %v452
      %v454 = vld [vmem:[#allocation3] sm:$0xff]
      %v455 = vmul.f32 %v433, %v454
      %v456 = vmul.f32 %v414, %v434
      %v457 = vadd.f32 %v455, %v456
      %458 = vst [vmem:[#allocation3] sm:$0xff] %v457
      %v459 = vtanh.pop %v457
      %v460 = vmul.f32 %v453, %v459
      %461 = vst [vmem:[#allocation2] sm:$0xff] %v460
      %s462 = scalar_lea.vmem %s132, 16
      %v463 = vld [vmem:[%s462] sm:$0xff]
      %v464 = vld [vmem:[%s462 + $0x8] sm:$0xff]
      %v465 = vunpack.c.l.bf16 %v463
      %v466 = vunpack.c.h.bf16 %v463
      %v467 = vunpack.c.l.bf16 %v464
      %v468 = vunpack.c.h.bf16 %v464
      %v469 = vld [vmem:[#allocation2] sm:$0xff]
      %v470 = vpack.c.bf16 %v469, %v469
      %471 = vmatpush.bf16.msra.mxu0 %v304
      %472 = vmatpush.bf16.msra.mxu0 %v300
      %473 = vmatpush.bf16.msra.mxu0 %v296
      %474 = vmatpush.bf16.msra.mxu0 %v292
      %475 = vmatpush.bf16.msra.mxu0 %v288
      %476 = vmatpush.bf16.msra.mxu0 %v284
      %477 = vmatpush.bf16.msra.mxu0 %v280
      %478 = vmatpush.bf16.msra.mxu0 %v276
      %479 = vmatmul.bf16.gmra.mxu0 %v470
      %v480 = vpop.f32.mrf.mxu0
      %v481 = vadd.f32 0.0, %v480
      %v482 = vpop.f32.mrf.mxu0
      %483 = vdwg.mxu0
      %484 = vmatpush.bf16.msra.mxu0 %v305
      %485 = vmatpush.bf16.msra.mxu0 %v301
      %486 = vmatpush.bf16.msra.mxu0 %v297
      %487 = vmatpush.bf16.msra.mxu0 %v293
      %488 = vmatpush.bf16.msra.mxu0 %v289
      %489 = vmatpush.bf16.msra.mxu0 %v285
      %490 = vmatpush.bf16.msra.mxu0 %v281
      %491 = vmatpush.bf16.msra.mxu0 %v277
      %492 = vmatmul.bf16.gmra.mxu0 %v470
      %v493 = vpop.f32.mrf.mxu0
      %v494 = vadd.f32 0.0, %v493
      %v495 = vpop.f32.mrf.mxu0
      %496 = vdwg.mxu0
      %497 = vmatpush.bf16.msra.mxu0 %v306
      %498 = vmatpush.bf16.msra.mxu0 %v302
      %499 = vmatpush.bf16.msra.mxu0 %v298
      %500 = vmatpush.bf16.msra.mxu0 %v294
      %501 = vmatpush.bf16.msra.mxu0 %v290
      %502 = vmatpush.bf16.msra.mxu0 %v286
      %503 = vmatpush.bf16.msra.mxu0 %v282
      %504 = vmatpush.bf16.msra.mxu0 %v278
      %505 = vmatmul.bf16.gmra.mxu0 %v470
      %v506 = vpop.f32.mrf.mxu0
      %v507 = vadd.f32 0.0, %v506
      %v508 = vpop.f32.mrf.mxu0
      %509 = vdwg.mxu0
      %510 = vmatpush.bf16.msra.mxu0 %v307
      %511 = vmatpush.bf16.msra.mxu0 %v303
      %512 = vmatpush.bf16.msra.mxu0 %v299
      %513 = vmatpush.bf16.msra.mxu0 %v295
      %514 = vmatpush.bf16.msra.mxu0 %v291
      %515 = vmatpush.bf16.msra.mxu0 %v287
      %516 = vmatpush.bf16.msra.mxu0 %v283
      %517 = vmatpush.bf16.msra.mxu0 %v279
      %518 = vmatmul.bf16.gmra.mxu0 %v470
      %v519 = vpop.f32.mrf.mxu0
      %v520 = vadd.f32 0.0, %v519
      %v521 = vpop.f32.mrf.mxu0
      %522 = vdwg.mxu0
      %v523 = vadd.f32 %v465, %v481
      %v524 = vadd.f32 %v466, %v494
      %v525 = vadd.f32 %v467, %v507
      %v526 = vadd.f32 %v468, %v520
      %v527 = vxor.u32 %v523, 2147483648
      %v528 = vmul.f32 %v527, 1.442695
      %v529 = vpow.pop %v528
      %v530 = vadd.f32 %v529, 1.0
      %v531 = vrcp.pop %v530
      %v532 = vmul.f32 %v530, %v531
      %v533 = vsub.f32 1.0, %v532
      %v534 = vmul.f32 %v531, %v533
      %v535 = vadd.f32 %v531, %v534
      %vm536 = vweird.f32 %v530
      %vm537 = vweird.f32 %v531
      %vm538 = vmor %vm536, %vm537
      %v539 = vsel %vm538, %v531, %v535
      %v540 = vand.u32 2147483647, %v530
      %vm541 = vcmp.eq.f32.partialorder %v540, 8.507059e+37
      %v542 = vand.u32 %v530, 2147483648
      %v543 = vor.u32 1.1754944e-38, %v542
      %v544 = vsel %vm541, %v543, %v539
      %v545 = vmul.f32 1.0, %v544
      %v546 = vxor.u32 %v524, 2147483648
      %v547 = vmul.f32 %v546, 1.442695
      %v548 = vpow.pop %v547
      %v549 = vadd.f32 %v548, 1.0
      %v550 = vrcp.pop %v549
      %v551 = vmul.f32 %v549, %v550
      %v552 = vsub.f32 1.0, %v551
      %v553 = vmul.f32 %v550, %v552
      %v554 = vadd.f32 %v550, %v553
      %vm555 = vweird.f32 %v549
      %vm556 = vweird.f32 %v550
      %vm557 = vmor %vm555, %vm556
      %v558 = vsel %vm557, %v550, %v554
      %v559 = vand.u32 2147483647, %v549
      %vm560 = vcmp.eq.f32.partialorder %v559, 8.507059e+37
      %v561 = vand.u32 %v549, 2147483648
      %v562 = vor.u32 1.1754944e-38, %v561
      %v563 = vsel %vm560, %v562, %v558
      %v564 = vmul.f32 1.0, %v563
      %v565 = vtanh.pop %v525
      %v566 = vxor.u32 %v526, 2147483648
      %v567 = vmul.f32 %v566, 1.442695
      %v568 = vpow.pop %v567
      %v569 = vadd.f32 %v568, 1.0
      %v570 = vrcp.pop %v569
      %v571 = vmul.f32 %v569, %v570
      %v572 = vsub.f32 1.0, %v571
      %v573 = vmul.f32 %v570, %v572
      %v574 = vadd.f32 %v570, %v573
      %vm575 = vweird.f32 %v569
      %vm576 = vweird.f32 %v570
      %vm577 = vmor %vm575, %vm576
      %v578 = vsel %vm577, %v570, %v574
      %v579 = vand.u32 2147483647, %v569
      %vm580 = vcmp.eq.f32.partialorder %v579, 8.507059e+37
      %v581 = vand.u32 %v569, 2147483648
      %v582 = vor.u32 1.1754944e-38, %v581
      %v583 = vsel %vm580, %v582, %v578
      %v584 = vmul.f32 1.0, %v583
      %v585 = vld [vmem:[#allocation3] sm:$0xff]
      %v586 = vmul.f32 %v564, %v585
      %v587 = vmul.f32 %v545, %v565
      %v588 = vadd.f32 %v586, %v587
      %589 = vst [vmem:[#allocation3] sm:$0xff] %v588
      %v590 = vtanh.pop %v588
      %v591 = vmul.f32 %v584, %v590
      %592 = vst [vmem:[#allocation2] sm:$0xff] %v591
      %s593 = scalar_lea.vmem %s132, 32
      %v594 = vld [vmem:[%s593] sm:$0xff]
      %v595 = vld [vmem:[%s593 + $0x8] sm:$0xff]
      %v596 = vunpack.c.l.bf16 %v594
      %v597 = vunpack.c.h.bf16 %v594
      %v598 = vunpack.c.l.bf16 %v595
      %v599 = vunpack.c.h.bf16 %v595
      %v600 = vld [vmem:[#allocation2] sm:$0xff]
      %v601 = vpack.c.bf16 %v600, %v600
      %602 = vmatpush.bf16.msra.mxu0 %v304
      %603 = vmatpush.bf16.msra.mxu0 %v300
      %604 = vmatpush.bf16.msra.mxu0 %v296
      %605 = vmatpush.bf16.msra.mxu0 %v292
      %606 = vmatpush.bf16.msra.mxu0 %v288
      %607 = vmatpush.bf16.msra.mxu0 %v284
      %608 = vmatpush.bf16.msra.mxu0 %v280
      %609 = vmatpush.bf16.msra.mxu0 %v276
      %610 = vmatmul.bf16.gmra.mxu0 %v601
      %v611 = vpop.f32.mrf.mxu0
      %v612 = vadd.f32 0.0, %v611
      %v613 = vpop.f32.mrf.mxu0
      %614 = vdwg.mxu0
      %615 = vmatpush.bf16.msra.mxu0 %v305
      %616 = vmatpush.bf16.msra.mxu0 %v301
      %617 = vmatpush.bf16.msra.mxu0 %v297
      %618 = vmatpush.bf16.msra.mxu0 %v293
      %619 = vmatpush.bf16.msra.mxu0 %v289
      %620 = vmatpush.bf16.msra.mxu0 %v285
      %621 = vmatpush.bf16.msra.mxu0 %v281
      %622 = vmatpush.bf16.msra.mxu0 %v277
      %623 = vmatmul.bf16.gmra.mxu0 %v601
      %v624 = vpop.f32.mrf.mxu0
      %v625 = vadd.f32 0.0, %v624
      %v626 = vpop.f32.mrf.mxu0
      %627 = vdwg.mxu0
      %628 = vmatpush.bf16.msra.mxu0 %v306
      %629 = vmatpush.bf16.msra.mxu0 %v302
      %630 = vmatpush.bf16.msra.mxu0 %v298
      %631 = vmatpush.bf16.msra.mxu0 %v294
      %632 = vmatpush.bf16.msra.mxu0 %v290
      %633 = vmatpush.bf16.msra.mxu0 %v286
      %634 = vmatpush.bf16.msra.mxu0 %v282
      %635 = vmatpush.bf16.msra.mxu0 %v278
      %636 = vmatmul.bf16.gmra.mxu0 %v601
      %v637 = vpop.f32.mrf.mxu0
      %v638 = vadd.f32 0.0, %v637
      %v639 = vpop.f32.mrf.mxu0
      %640 = vdwg.mxu0
      %641 = vmatpush.bf16.msra.mxu0 %v307
      %642 = vmatpush.bf16.msra.mxu0 %v303
      %643 = vmatpush.bf16.msra.mxu0 %v299
      %644 = vmatpush.bf16.msra.mxu0 %v295
      %645 = vmatpush.bf16.msra.mxu0 %v291
      %646 = vmatpush.bf16.msra.mxu0 %v287
      %647 = vmatpush.bf16.msra.mxu0 %v283
      %648 = vmatpush.bf16.msra.mxu0 %v279
      %649 = vmatmul.bf16.gmra.mxu0 %v601
      %v650 = vpop.f32.mrf.mxu0
      %v651 = vadd.f32 0.0, %v650
      %v652 = vpop.f32.mrf.mxu0
      %653 = vdwg.mxu0
      %v654 = vadd.f32 %v596, %v612
      %v655 = vadd.f32 %v597, %v625
      %v656 = vadd.f32 %v598, %v638
      %v657 = vadd.f32 %v599, %v651
      %v658 = vxor.u32 %v654, 2147483648
      %v659 = vmul.f32 %v658, 1.442695
      %v660 = vpow.pop %v659
      %v661 = vadd.f32 %v660, 1.0
      %v662 = vrcp.pop %v661
      %v663 = vmul.f32 %v661, %v662
      %v664 = vsub.f32 1.0, %v663
      %v665 = vmul.f32 %v662, %v664
      %v666 = vadd.f32 %v662, %v665
      %vm667 = vweird.f32 %v661
      %vm668 = vweird.f32 %v662
      %vm669 = vmor %vm667, %vm668
      %v670 = vsel %vm669, %v662, %v666
      %v671 = vand.u32 2147483647, %v661
      %vm672 = vcmp.eq.f32.partialorder %v671, 8.507059e+37
      %v673 = vand.u32 %v661, 2147483648
      %v674 = vor.u32 1.1754944e-38, %v673
      %v675 = vsel %vm672, %v674, %v670
      %v676 = vmul.f32 1.0, %v675
      %v677 = vxor.u32 %v655, 2147483648
      %v678 = vmul.f32 %v677, 1.442695
      %v679 = vpow.pop %v678
      %v680 = vadd.f32 %v679, 1.0
      %v681 = vrcp.pop %v680
      %v682 = vmul.f32 %v680, %v681
      %v683 = vsub.f32 1.0, %v682
      %v684 = vmul.f32 %v681, %v683
      %v685 = vadd.f32 %v681, %v684
      %vm686 = vweird.f32 %v680
      %vm687 = vweird.f32 %v681
      %vm688 = vmor %vm686, %vm687
      %v689 = vsel %vm688, %v681, %v685
      %v690 = vand.u32 2147483647, %v680
      %vm691 = vcmp.eq.f32.partialorder %v690, 8.507059e+37
      %v692 = vand.u32 %v680, 2147483648
      %v693 = vor.u32 1.1754944e-38, %v692
      %v694 = vsel %vm691, %v693, %v689
      %v695 = vmul.f32 1.0, %v694
      %v696 = vtanh.pop %v656
      %v697 = vxor.u32 %v657, 2147483648
      %v698 = vmul.f32 %v697, 1.442695
      %v699 = vpow.pop %v698
      %v700 = vadd.f32 %v699, 1.0
      %v701 = vrcp.pop %v700
      %v702 = vmul.f32 %v700, %v701
      %v703 = vsub.f32 1.0, %v702
      %v704 = vmul.f32 %v701, %v703
      %v705 = vadd.f32 %v701, %v704
      %vm706 = vweird.f32 %v700
      %vm707 = vweird.f32 %v701
      %vm708 = vmor %vm706, %vm707
      %v709 = vsel %vm708, %v701, %v705
      %v710 = vand.u32 2147483647, %v700
      %vm711 = vcmp.eq.f32.partialorder %v710, 8.507059e+37
      %v712 = vand.u32 %v700, 2147483648
      %v713 = vor.u32 1.1754944e-38, %v712
      %v714 = vsel %vm711, %v713, %v709
      %v715 = vmul.f32 1.0, %v714
      %v716 = vld [vmem:[#allocation3] sm:$0xff]
      %v717 = vmul.f32 %v695, %v716
      %v718 = vmul.f32 %v676, %v696
      %v719 = vadd.f32 %v717, %v718
      %720 = vst [vmem:[#allocation3] sm:$0xff] %v719
      %v721 = vtanh.pop %v719
      %v722 = vmul.f32 %v715, %v721
      %723 = vst [vmem:[#allocation2] sm:$0xff] %v722
      %s724 = scalar_lea.vmem %s132, 48
      %v725 = vld [vmem:[%s724] sm:$0xff]
      %v726 = vld [vmem:[%s724 + $0x8] sm:$0xff]
      %v727 = vunpack.c.l.bf16 %v725
      %v728 = vunpack.c.h.bf16 %v725
      %v729 = vunpack.c.l.bf16 %v726
      %v730 = vunpack.c.h.bf16 %v726
      %v731 = vld [vmem:[#allocation2] sm:$0xff]
      %v732 = vpack.c.bf16 %v731, %v731
      %733 = vmatpush.bf16.msra.mxu0 %v304
      %734 = vmatpush.bf16.msra.mxu0 %v300
      %735 = vmatpush.bf16.msra.mxu0 %v296
      %736 = vmatpush.bf16.msra.mxu0 %v292
      %737 = vmatpush.bf16.msra.mxu0 %v288
      %738 = vmatpush.bf16.msra.mxu0 %v284
      %739 = vmatpush.bf16.msra.mxu0 %v280
      %740 = vmatpush.bf16.msra.mxu0 %v276
      %741 = vmatmul.bf16.gmra.mxu0 %v732
      %v742 = vpop.f32.mrf.mxu0
      %v743 = vadd.f32 0.0, %v742
      %v744 = vpop.f32.mrf.mxu0
      %745 = vdwg.mxu0
      %746 = vmatpush.bf16.msra.mxu0 %v305
      %747 = vmatpush.bf16.msra.mxu0 %v301
      %748 = vmatpush.bf16.msra.mxu0 %v297
      %749 = vmatpush.bf16.msra.mxu0 %v293
      %750 = vmatpush.bf16.msra.mxu0 %v289
      %751 = vmatpush.bf16.msra.mxu0 %v285
      %752 = vmatpush.bf16.msra.mxu0 %v281
      %753 = vmatpush.bf16.msra.mxu0 %v277
      %754 = vmatmul.bf16.gmra.mxu0 %v732
      %v755 = vpop.f32.mrf.mxu0
      %v756 = vadd.f32 0.0, %v755
      %v757 = vpop.f32.mrf.mxu0
      %758 = vdwg.mxu0
      %759 = vmatpush.bf16.msra.mxu0 %v306
      %760 = vmatpush.bf16.msra.mxu0 %v302
      %761 = vmatpush.bf16.msra.mxu0 %v298
      %762 = vmatpush.bf16.msra.mxu0 %v294
      %763 = vmatpush.bf16.msra.mxu0 %v290
      %764 = vmatpush.bf16.msra.mxu0 %v286
      %765 = vmatpush.bf16.msra.mxu0 %v282
      %766 = vmatpush.bf16.msra.mxu0 %v278
      %767 = vmatmul.bf16.gmra.mxu0 %v732
      %v768 = vpop.f32.mrf.mxu0
      %v769 = vadd.f32 0.0, %v768
      %v770 = vpop.f32.mrf.mxu0
      %771 = vdwg.mxu0
      %772 = vmatpush.bf16.msra.mxu0 %v307
      %773 = vmatpush.bf16.msra.mxu0 %v303
      %774 = vmatpush.bf16.msra.mxu0 %v299
      %775 = vmatpush.bf16.msra.mxu0 %v295
      %776 = vmatpush.bf16.msra.mxu0 %v291
      %777 = vmatpush.bf16.msra.mxu0 %v287
      %778 = vmatpush.bf16.msra.mxu0 %v283
      %779 = vmatpush.bf16.msra.mxu0 %v279
      %780 = vmatmul.bf16.gmra.mxu0 %v732
      %v781 = vpop.f32.mrf.mxu0
      %v782 = vadd.f32 0.0, %v781
      %v783 = vpop.f32.mrf.mxu0
      %784 = vdwg.mxu0
      %v785 = vadd.f32 %v727, %v743
      %v786 = vadd.f32 %v728, %v756
      %v787 = vadd.f32 %v729, %v769
      %v788 = vadd.f32 %v730, %v782
      %v789 = vxor.u32 %v785, 2147483648
      %v790 = vmul.f32 %v789, 1.442695
      %v791 = vpow.pop %v790
      %v792 = vadd.f32 %v791, 1.0
      %v793 = vrcp.pop %v792
      %v794 = vmul.f32 %v792, %v793
      %v795 = vsub.f32 1.0, %v794
      %v796 = vmul.f32 %v793, %v795
      %v797 = vadd.f32 %v793, %v796
      %vm798 = vweird.f32 %v792
      %vm799 = vweird.f32 %v793
      %vm800 = vmor %vm798, %vm799
      %v801 = vsel %vm800, %v793, %v797
      %v802 = vand.u32 2147483647, %v792
      %vm803 = vcmp.eq.f32.partialorder %v802, 8.507059e+37
      %v804 = vand.u32 %v792, 2147483648
      %v805 = vor.u32 1.1754944e-38, %v804
      %v806 = vsel %vm803, %v805, %v801
      %v807 = vmul.f32 1.0, %v806
      %v808 = vxor.u32 %v786, 2147483648
      %v809 = vmul.f32 %v808, 1.442695
      %v810 = vpow.pop %v809
      %v811 = vadd.f32 %v810, 1.0
      %v812 = vrcp.pop %v811
      %v813 = vmul.f32 %v811, %v812
      %v814 = vsub.f32 1.0, %v813
      %v815 = vmul.f32 %v812, %v814
      %v816 = vadd.f32 %v812, %v815
      %vm817 = vweird.f32 %v811
      %vm818 = vweird.f32 %v812
      %vm819 = vmor %vm817, %vm818
      %v820 = vsel %vm819, %v812, %v816
      %v821 = vand.u32 2147483647, %v811
      %vm822 = vcmp.eq.f32.partialorder %v821, 8.507059e+37
      %v823 = vand.u32 %v811, 2147483648
      %v824 = vor.u32 1.1754944e-38, %v823
      %v825 = vsel %vm822, %v824, %v820
      %v826 = vmul.f32 1.0, %v825
      %v827 = vtanh.pop %v787
      %v828 = vxor.u32 %v788, 2147483648
      %v829 = vmul.f32 %v828, 1.442695
      %v830 = vpow.pop %v829
      %v831 = vadd.f32 %v830, 1.0
      %v832 = vrcp.pop %v831
      %v833 = vmul.f32 %v831, %v832
      %v834 = vsub.f32 1.0, %v833
      %v835 = vmul.f32 %v832, %v834
      %v836 = vadd.f32 %v832, %v835
      %vm837 = vweird.f32 %v831
      %vm838 = vweird.f32 %v832
      %vm839 = vmor %vm837, %vm838
      %v840 = vsel %vm839, %v832, %v836
      %v841 = vand.u32 2147483647, %v831
      %vm842 = vcmp.eq.f32.partialorder %v841, 8.507059e+37
      %v843 = vand.u32 %v831, 2147483648
      %v844 = vor.u32 1.1754944e-38, %v843
      %v845 = vsel %vm842, %v844, %v840
      %v846 = vmul.f32 1.0, %v845
      %v847 = vld [vmem:[#allocation3] sm:$0xff]
      %v848 = vmul.f32 %v826, %v847
      %v849 = vmul.f32 %v807, %v827
      %v850 = vadd.f32 %v848, %v849
      %851 = vst [vmem:[#allocation3] sm:$0xff] %v850
      %v852 = vtanh.pop %v850
      %v853 = vmul.f32 %v846, %v852
      %854 = vst [vmem:[#allocation2] sm:$0xff] %v853
      %s855 = scalar_lea.vmem %s132, 64
      %v856 = vld [vmem:[%s855] sm:$0xff]
      %v857 = vld [vmem:[%s855 + $0x8] sm:$0xff]
      %v858 = vunpack.c.l.bf16 %v856
      %v859 = vunpack.c.h.bf16 %v856
      %v860 = vunpack.c.l.bf16 %v857
      %v861 = vunpack.c.h.bf16 %v857
      %v862 = vld [vmem:[#allocation2] sm:$0xff]
      %v863 = vpack.c.bf16 %v862, %v862
      %864 = vmatpush.bf16.msra.mxu0 %v304
      %865 = vmatpush.bf16.msra.mxu0 %v300
      %866 = vmatpush.bf16.msra.mxu0 %v296
      %867 = vmatpush.bf16.msra.mxu0 %v292
      %868 = vmatpush.bf16.msra.mxu0 %v288
      %869 = vmatpush.bf16.msra.mxu0 %v284
      %870 = vmatpush.bf16.msra.mxu0 %v280
      %871 = vmatpush.bf16.msra.mxu0 %v276
      %872 = vmatmul.bf16.gmra.mxu0 %v863
      %v873 = vpop.f32.mrf.mxu0
      %v874 = vadd.f32 0.0, %v873
      %v875 = vpop.f32.mrf.mxu0
      %876 = vdwg.mxu0
      %877 = vmatpush.bf16.msra.mxu0 %v305
      %878 = vmatpush.bf16.msra.mxu0 %v301
      %879 = vmatpush.bf16.msra.mxu0 %v297
      %880 = vmatpush.bf16.msra.mxu0 %v293
      %881 = vmatpush.bf16.msra.mxu0 %v289
      %882 = vmatpush.bf16.msra.mxu0 %v285
      %883 = vmatpush.bf16.msra.mxu0 %v281
      %884 = vmatpush.bf16.msra.mxu0 %v277
      %885 = vmatmul.bf16.gmra.mxu0 %v863
      %v886 = vpop.f32.mrf.mxu0
      %v887 = vadd.f32 0.0, %v886
      %v888 = vpop.f32.mrf.mxu0
      %889 = vdwg.mxu0
      %890 = vmatpush.bf16.msra.mxu0 %v306
      %891 = vmatpush.bf16.msra.mxu0 %v302
      %892 = vmatpush.bf16.msra.mxu0 %v298
      %893 = vmatpush.bf16.msra.mxu0 %v294
      %894 = vmatpush.bf16.msra.mxu0 %v290
      %895 = vmatpush.bf16.msra.mxu0 %v286
      %896 = vmatpush.bf16.msra.mxu0 %v282
      %897 = vmatpush.bf16.msra.mxu0 %v278
      %898 = vmatmul.bf16.gmra.mxu0 %v863
      %v899 = vpop.f32.mrf.mxu0
      %v900 = vadd.f32 0.0, %v899
      %v901 = vpop.f32.mrf.mxu0
      %902 = vdwg.mxu0
      %903 = vmatpush.bf16.msra.mxu0 %v307
      %904 = vmatpush.bf16.msra.mxu0 %v303
      %905 = vmatpush.bf16.msra.mxu0 %v299
      %906 = vmatpush.bf16.msra.mxu0 %v295
      %907 = vmatpush.bf16.msra.mxu0 %v291
      %908 = vmatpush.bf16.msra.mxu0 %v287
      %909 = vmatpush.bf16.msra.mxu0 %v283
      %910 = vmatpush.bf16.msra.mxu0 %v279
      %911 = vmatmul.bf16.gmra.mxu0 %v863
      %v912 = vpop.f32.mrf.mxu0
      %v913 = vadd.f32 0.0, %v912
      %v914 = vpop.f32.mrf.mxu0
      %915 = vdwg.mxu0
      %v916 = vadd.f32 %v858, %v874
      %v917 = vadd.f32 %v859, %v887
      %v918 = vadd.f32 %v860, %v900
      %v919 = vadd.f32 %v861, %v913
      %v920 = vxor.u32 %v916, 2147483648
      %v921 = vmul.f32 %v920, 1.442695
      %v922 = vpow.pop %v921
      %v923 = vadd.f32 %v922, 1.0
      %v924 = vrcp.pop %v923
      %v925 = vmul.f32 %v923, %v924
      %v926 = vsub.f32 1.0, %v925
      %v927 = vmul.f32 %v924, %v926
      %v928 = vadd.f32 %v924, %v927
      %vm929 = vweird.f32 %v923
      %vm930 = vweird.f32 %v924
      %vm931 = vmor %vm929, %vm930
      %v932 = vsel %vm931, %v924, %v928
      %v933 = vand.u32 2147483647, %v923
      %vm934 = vcmp.eq.f32.partialorder %v933, 8.507059e+37
      %v935 = vand.u32 %v923, 2147483648
      %v936 = vor.u32 1.1754944e-38, %v935
      %v937 = vsel %vm934, %v936, %v932
      %v938 = vmul.f32 1.0, %v937
      %v939 = vxor.u32 %v917, 2147483648
      %v940 = vmul.f32 %v939, 1.442695
      %v941 = vpow.pop %v940
      %v942 = vadd.f32 %v941, 1.0
      %v943 = vrcp.pop %v942
      %v944 = vmul.f32 %v942, %v943
      %v945 = vsub.f32 1.0, %v944
      %v946 = vmul.f32 %v943, %v945
      %v947 = vadd.f32 %v943, %v946
      %vm948 = vweird.f32 %v942
      %vm949 = vweird.f32 %v943
      %vm950 = vmor %vm948, %vm949
      %v951 = vsel %vm950, %v943, %v947
      %v952 = vand.u32 2147483647, %v942
      %vm953 = vcmp.eq.f32.partialorder %v952, 8.507059e+37
      %v954 = vand.u32 %v942, 2147483648
      %v955 = vor.u32 1.1754944e-38, %v954
      %v956 = vsel %vm953, %v955, %v951
      %v957 = vmul.f32 1.0, %v956
      %v958 = vtanh.pop %v918
      %v959 = vxor.u32 %v919, 2147483648
      %v960 = vmul.f32 %v959, 1.442695
      %v961 = vpow.pop %v960
      %v962 = vadd.f32 %v961, 1.0
      %v963 = vrcp.pop %v962
      %v964 = vmul.f32 %v962, %v963
      %v965 = vsub.f32 1.0, %v964
      %v966 = vmul.f32 %v963, %v965
      %v967 = vadd.f32 %v963, %v966
      %vm968 = vweird.f32 %v962
      %vm969 = vweird.f32 %v963
      %vm970 = vmor %vm968, %vm969
      %v971 = vsel %vm970, %v963, %v967
      %v972 = vand.u32 2147483647, %v962
      %vm973 = vcmp.eq.f32.partialorder %v972, 8.507059e+37
      %v974 = vand.u32 %v962, 2147483648
      %v975 = vor.u32 1.1754944e-38, %v974
      %v976 = vsel %vm973, %v975, %v971
      %v977 = vmul.f32 1.0, %v976
      %v978 = vld [vmem:[#allocation3] sm:$0xff]
      %v979 = vmul.f32 %v957, %v978
      %v980 = vmul.f32 %v938, %v958
      %v981 = vadd.f32 %v979, %v980
      %982 = vst [vmem:[#allocation3] sm:$0xff] %v981
      %v983 = vtanh.pop %v981
      %v984 = vmul.f32 %v977, %v983
      %985 = vst [vmem:[#allocation2] sm:$0xff] %v984
      %s986 = scalar_lea.vmem %s132, 80
      %v987 = vld [vmem:[%s986] sm:$0xff]
      %v988 = vld [vmem:[%s986 + $0x8] sm:$0xff]
      %v989 = vunpack.c.l.bf16 %v987
      %v990 = vunpack.c.h.bf16 %v987
      %v991 = vunpack.c.l.bf16 %v988
      %v992 = vunpack.c.h.bf16 %v988
      %v993 = vld [vmem:[#allocation2] sm:$0xff]
      %v994 = vpack.c.bf16 %v993, %v993
      %995 = vmatpush.bf16.msra.mxu0 %v304
      %996 = vmatpush.bf16.msra.mxu0 %v300
      %997 = vmatpush.bf16.msra.mxu0 %v296
      %998 = vmatpush.bf16.msra.mxu0 %v292
      %999 = vmatpush.bf16.msra.mxu0 %v288
      %1000 = vmatpush.bf16.msra.mxu0 %v284
      %1001 = vmatpush.bf16.msra.mxu0 %v280
      %1002 = vmatpush.bf16.msra.mxu0 %v276
      %1003 = vmatmul.bf16.gmra.mxu0 %v994
      %v1004 = vpop.f32.mrf.mxu0
      %v1005 = vadd.f32 0.0, %v1004
      %v1006 = vpop.f32.mrf.mxu0
      %1007 = vdwg.mxu0
      %1008 = vmatpush.bf16.msra.mxu0 %v305
      %1009 = vmatpush.bf16.msra.mxu0 %v301
      %1010 = vmatpush.bf16.msra.mxu0 %v297
      %1011 = vmatpush.bf16.msra.mxu0 %v293
      %1012 = vmatpush.bf16.msra.mxu0 %v289
      %1013 = vmatpush.bf16.msra.mxu0 %v285
      %1014 = vmatpush.bf16.msra.mxu0 %v281
      %1015 = vmatpush.bf16.msra.mxu0 %v277
      %1016 = vmatmul.bf16.gmra.mxu0 %v994
      %v1017 = vpop.f32.mrf.mxu0
      %v1018 = vadd.f32 0.0, %v1017
      %v1019 = vpop.f32.mrf.mxu0
      %1020 = vdwg.mxu0
      %1021 = vmatpush.bf16.msra.mxu0 %v306
      %1022 = vmatpush.bf16.msra.mxu0 %v302
      %1023 = vmatpush.bf16.msra.mxu0 %v298
      %1024 = vmatpush.bf16.msra.mxu0 %v294
      %1025 = vmatpush.bf16.msra.mxu0 %v290
      %1026 = vmatpush.bf16.msra.mxu0 %v286
      %1027 = vmatpush.bf16.msra.mxu0 %v282
      %1028 = vmatpush.bf16.msra.mxu0 %v278
      %1029 = vmatmul.bf16.gmra.mxu0 %v994
      %v1030 = vpop.f32.mrf.mxu0
      %v1031 = vadd.f32 0.0, %v1030
      %v1032 = vpop.f32.mrf.mxu0
      %1033 = vdwg.mxu0
      %1034 = vmatpush.bf16.msra.mxu0 %v307
      %1035 = vmatpush.bf16.msra.mxu0 %v303
      %1036 = vmatpush.bf16.msra.mxu0 %v299
      %1037 = vmatpush.bf16.msra.mxu0 %v295
      %1038 = vmatpush.bf16.msra.mxu0 %v291
      %1039 = vmatpush.bf16.msra.mxu0 %v287
      %1040 = vmatpush.bf16.msra.mxu0 %v283
      %1041 = vmatpush.bf16.msra.mxu0 %v279
      %1042 = vmatmul.bf16.gmra.mxu0 %v994
      %v1043 = vpop.f32.mrf.mxu0
      %v1044 = vadd.f32 0.0, %v1043
      %v1045 = vpop.f32.mrf.mxu0
      %1046 = vdwg.mxu0
      %v1047 = vadd.f32 %v989, %v1005
      %v1048 = vadd.f32 %v990, %v1018
      %v1049 = vadd.f32 %v991, %v1031
      %v1050 = vadd.f32 %v992, %v1044
      %v1051 = vxor.u32 %v1047, 2147483648
      %v1052 = vmul.f32 %v1051, 1.442695
      %v1053 = vpow.pop %v1052
      %v1054 = vadd.f32 %v1053, 1.0
      %v1055 = vrcp.pop %v1054
      %v1056 = vmul.f32 %v1054, %v1055
      %v1057 = vsub.f32 1.0, %v1056
      %v1058 = vmul.f32 %v1055, %v1057
      %v1059 = vadd.f32 %v1055, %v1058
      %vm1060 = vweird.f32 %v1054
      %vm1061 = vweird.f32 %v1055
      %vm1062 = vmor %vm1060, %vm1061
      %v1063 = vsel %vm1062, %v1055, %v1059
      %v1064 = vand.u32 2147483647, %v1054
      %vm1065 = vcmp.eq.f32.partialorder %v1064, 8.507059e+37
      %v1066 = vand.u32 %v1054, 2147483648
      %v1067 = vor.u32 1.1754944e-38, %v1066
      %v1068 = vsel %vm1065, %v1067, %v1063
      %v1069 = vmul.f32 1.0, %v1068
      %v1070 = vxor.u32 %v1048, 2147483648
      %v1071 = vmul.f32 %v1070, 1.442695
      %v1072 = vpow.pop %v1071
      %v1073 = vadd.f32 %v1072, 1.0
      %v1074 = vrcp.pop %v1073
      %v1075 = vmul.f32 %v1073, %v1074
      %v1076 = vsub.f32 1.0, %v1075
      %v1077 = vmul.f32 %v1074, %v1076
      %v1078 = vadd.f32 %v1074, %v1077
      %vm1079 = vweird.f32 %v1073
      %vm1080 = vweird.f32 %v1074
      %vm1081 = vmor %vm1079, %vm1080
      %v1082 = vsel %vm1081, %v1074, %v1078
      %v1083 = vand.u32 2147483647, %v1073
      %vm1084 = vcmp.eq.f32.partialorder %v1083, 8.507059e+37
      %v1085 = vand.u32 %v1073, 2147483648
      %v1086 = vor.u32 1.1754944e-38, %v1085
      %v1087 = vsel %vm1084, %v1086, %v1082
      %v1088 = vmul.f32 1.0, %v1087
      %v1089 = vtanh.pop %v1049
      %v1090 = vxor.u32 %v1050, 2147483648
      %v1091 = vmul.f32 %v1090, 1.442695
      %v1092 = vpow.pop %v1091
      %v1093 = vadd.f32 %v1092, 1.0
      %v1094 = vrcp.pop %v1093
      %v1095 = vmul.f32 %v1093, %v1094
      %v1096 = vsub.f32 1.0, %v1095
      %v1097 = vmul.f32 %v1094, %v1096
      %v1098 = vadd.f32 %v1094, %v1097
      %vm1099 = vweird.f32 %v1093
      %vm1100 = vweird.f32 %v1094
      %vm1101 = vmor %vm1099, %vm1100
      %v1102 = vsel %vm1101, %v1094, %v1098
      %v1103 = vand.u32 2147483647, %v1093
      %vm1104 = vcmp.eq.f32.partialorder %v1103, 8.507059e+37
      %v1105 = vand.u32 %v1093, 2147483648
      %v1106 = vor.u32 1.1754944e-38, %v1105
      %v1107 = vsel %vm1104, %v1106, %v1102
      %v1108 = vmul.f32 1.0, %v1107
      %v1109 = vld [vmem:[#allocation3] sm:$0xff]
      %v1110 = vmul.f32 %v1088, %v1109
      %v1111 = vmul.f32 %v1069, %v1089
      %v1112 = vadd.f32 %v1110, %v1111
      %1113 = vst [vmem:[#allocation3] sm:$0xff] %v1112
      %v1114 = vtanh.pop %v1112
      %v1115 = vmul.f32 %v1108, %v1114
      %1116 = vst [vmem:[#allocation2] sm:$0xff] %v1115
      %s1117 = scalar_lea.vmem %s132, 96
      %v1118 = vld [vmem:[%s1117] sm:$0xff]
      %v1119 = vld [vmem:[%s1117 + $0x8] sm:$0xff]
      %v1120 = vunpack.c.l.bf16 %v1118
      %v1121 = vunpack.c.h.bf16 %v1118
      %v1122 = vunpack.c.l.bf16 %v1119
      %v1123 = vunpack.c.h.bf16 %v1119
      %v1124 = vld [vmem:[#allocation2] sm:$0xff]
      %v1125 = vpack.c.bf16 %v1124, %v1124
      %1126 = vmatpush.bf16.msra.mxu0 %v304
      %1127 = vmatpush.bf16.msra.mxu0 %v300
      %1128 = vmatpush.bf16.msra.mxu0 %v296
      %1129 = vmatpush.bf16.msra.mxu0 %v292
      %1130 = vmatpush.bf16.msra.mxu0 %v288
      %1131 = vmatpush.bf16.msra.mxu0 %v284
      %1132 = vmatpush.bf16.msra.mxu0 %v280
      %1133 = vmatpush.bf16.msra.mxu0 %v276
      %1134 = vmatmul.bf16.gmra.mxu0 %v1125
      %v1135 = vpop.f32.mrf.mxu0
      %v1136 = vadd.f32 0.0, %v1135
      %v1137 = vpop.f32.mrf.mxu0
      %1138 = vdwg.mxu0
      %1139 = vmatpush.bf16.msra.mxu0 %v305
      %1140 = vmatpush.bf16.msra.mxu0 %v301
      %1141 = vmatpush.bf16.msra.mxu0 %v297
      %1142 = vmatpush.bf16.msra.mxu0 %v293
      %1143 = vmatpush.bf16.msra.mxu0 %v289
      %1144 = vmatpush.bf16.msra.mxu0 %v285
      %1145 = vmatpush.bf16.msra.mxu0 %v281
      %1146 = vmatpush.bf16.msra.mxu0 %v277
      %1147 = vmatmul.bf16.gmra.mxu0 %v1125
      %v1148 = vpop.f32.mrf.mxu0
      %v1149 = vadd.f32 0.0, %v1148
      %v1150 = vpop.f32.mrf.mxu0
      %1151 = vdwg.mxu0
      %1152 = vmatpush.bf16.msra.mxu0 %v306
      %1153 = vmatpush.bf16.msra.mxu0 %v302
      %1154 = vmatpush.bf16.msra.mxu0 %v298
      %1155 = vmatpush.bf16.msra.mxu0 %v294
      %1156 = vmatpush.bf16.msra.mxu0 %v290
      %1157 = vmatpush.bf16.msra.mxu0 %v286
      %1158 = vmatpush.bf16.msra.mxu0 %v282
      %1159 = vmatpush.bf16.msra.mxu0 %v278
      %1160 = vmatmul.bf16.gmra.mxu0 %v1125
      %v1161 = vpop.f32.mrf.mxu0
      %v1162 = vadd.f32 0.0, %v1161
      %v1163 = vpop.f32.mrf.mxu0
      %1164 = vdwg.mxu0
      %1165 = vmatpush.bf16.msra.mxu0 %v307
      %1166 = vmatpush.bf16.msra.mxu0 %v303
      %1167 = vmatpush.bf16.msra.mxu0 %v299
      %1168 = vmatpush.bf16.msra.mxu0 %v295
      %1169 = vmatpush.bf16.msra.mxu0 %v291
      %1170 = vmatpush.bf16.msra.mxu0 %v287
      %1171 = vmatpush.bf16.msra.mxu0 %v283
      %1172 = vmatpush.bf16.msra.mxu0 %v279
      %1173 = vmatmul.bf16.gmra.mxu0 %v1125
      %v1174 = vpop.f32.mrf.mxu0
      %v1175 = vadd.f32 0.0, %v1174
      %v1176 = vpop.f32.mrf.mxu0
      %1177 = vdwg.mxu0
      %v1178 = vadd.f32 %v1120, %v1136
      %v1179 = vadd.f32 %v1121, %v1149
      %v1180 = vadd.f32 %v1122, %v1162
      %v1181 = vadd.f32 %v1123, %v1175
      %v1182 = vxor.u32 %v1178, 2147483648
      %v1183 = vmul.f32 %v1182, 1.442695
      %v1184 = vpow.pop %v1183
      %v1185 = vadd.f32 %v1184, 1.0
      %v1186 = vrcp.pop %v1185
      %v1187 = vmul.f32 %v1185, %v1186
      %v1188 = vsub.f32 1.0, %v1187
      %v1189 = vmul.f32 %v1186, %v1188
      %v1190 = vadd.f32 %v1186, %v1189
      %vm1191 = vweird.f32 %v1185
      %vm1192 = vweird.f32 %v1186
      %vm1193 = vmor %vm1191, %vm1192
      %v1194 = vsel %vm1193, %v1186, %v1190
      %v1195 = vand.u32 2147483647, %v1185
      %vm1196 = vcmp.eq.f32.partialorder %v1195, 8.507059e+37
      %v1197 = vand.u32 %v1185, 2147483648
      %v1198 = vor.u32 1.1754944e-38, %v1197
      %v1199 = vsel %vm1196, %v1198, %v1194
      %v1200 = vmul.f32 1.0, %v1199
      %v1201 = vxor.u32 %v1179, 2147483648
      %v1202 = vmul.f32 %v1201, 1.442695
      %v1203 = vpow.pop %v1202
      %v1204 = vadd.f32 %v1203, 1.0
      %v1205 = vrcp.pop %v1204
      %v1206 = vmul.f32 %v1204, %v1205
      %v1207 = vsub.f32 1.0, %v1206
      %v1208 = vmul.f32 %v1205, %v1207
      %v1209 = vadd.f32 %v1205, %v1208
      %vm1210 = vweird.f32 %v1204
      %vm1211 = vweird.f32 %v1205
      %vm1212 = vmor %vm1210, %vm1211
      %v1213 = vsel %vm1212, %v1205, %v1209
      %v1214 = vand.u32 2147483647, %v1204
      %vm1215 = vcmp.eq.f32.partialorder %v1214, 8.507059e+37
      %v1216 = vand.u32 %v1204, 2147483648
      %v1217 = vor.u32 1.1754944e-38, %v1216
      %v1218 = vsel %vm1215, %v1217, %v1213
      %v1219 = vmul.f32 1.0, %v1218
      %v1220 = vtanh.pop %v1180
      %v1221 = vxor.u32 %v1181, 2147483648
      %v1222 = vmul.f32 %v1221, 1.442695
      %v1223 = vpow.pop %v1222
      %v1224 = vadd.f32 %v1223, 1.0
      %v1225 = vrcp.pop %v1224
      %v1226 = vmul.f32 %v1224, %v1225
      %v1227 = vsub.f32 1.0, %v1226
      %v1228 = vmul.f32 %v1225, %v1227
      %v1229 = vadd.f32 %v1225, %v1228
      %vm1230 = vweird.f32 %v1224
      %vm1231 = vweird.f32 %v1225
      %vm1232 = vmor %vm1230, %vm1231
      %v1233 = vsel %vm1232, %v1225, %v1229
      %v1234 = vand.u32 2147483647, %v1224
      %vm1235 = vcmp.eq.f32.partialorder %v1234, 8.507059e+37
      %v1236 = vand.u32 %v1224, 2147483648
      %v1237 = vor.u32 1.1754944e-38, %v1236
      %v1238 = vsel %vm1235, %v1237, %v1233
      %v1239 = vmul.f32 1.0, %v1238
      %v1240 = vld [vmem:[#allocation3] sm:$0xff]
      %v1241 = vmul.f32 %v1219, %v1240
      %v1242 = vmul.f32 %v1200, %v1220
      %v1243 = vadd.f32 %v1241, %v1242
      %1244 = vst [vmem:[#allocation3] sm:$0xff] %v1243
      %v1245 = vtanh.pop %v1243
      %v1246 = vmul.f32 %v1239, %v1245
      %1247 = vst [vmem:[#allocation2] sm:$0xff] %v1246
      %s1248 = scalar_lea.vmem %s132, 112
      %v1249 = vld [vmem:[%s1248] sm:$0xff]
      %v1250 = vld [vmem:[%s1248 + $0x8] sm:$0xff]
      %v1251 = vunpack.c.l.bf16 %v1249
      %v1252 = vunpack.c.h.bf16 %v1249
      %v1253 = vunpack.c.l.bf16 %v1250
      %v1254 = vunpack.c.h.bf16 %v1250
      %v1255 = vld [vmem:[#allocation2] sm:$0xff]
      %v1256 = vpack.c.bf16 %v1255, %v1255
      %1257 = vmatpush.bf16.msra.mxu0 %v304
      %1258 = vmatpush.bf16.msra.mxu0 %v300
      %1259 = vmatpush.bf16.msra.mxu0 %v296
      %1260 = vmatpush.bf16.msra.mxu0 %v292
      %1261 = vmatpush.bf16.msra.mxu0 %v288
      %1262 = vmatpush.bf16.msra.mxu0 %v284
      %1263 = vmatpush.bf16.msra.mxu0 %v280
      %1264 = vmatpush.bf16.msra.mxu0 %v276
      %1265 = vmatmul.bf16.gmra.mxu0 %v1256
      %v1266 = vpop.f32.mrf.mxu0
      %v1267 = vadd.f32 0.0, %v1266
      %v1268 = vpop.f32.mrf.mxu0
      %1269 = vdwg.mxu0
      %1270 = vmatpush.bf16.msra.mxu0 %v305
      %1271 = vmatpush.bf16.msra.mxu0 %v301
      %1272 = vmatpush.bf16.msra.mxu0 %v297
      %1273 = vmatpush.bf16.msra.mxu0 %v293
      %1274 = vmatpush.bf16.msra.mxu0 %v289
      %1275 = vmatpush.bf16.msra.mxu0 %v285
      %1276 = vmatpush.bf16.msra.mxu0 %v281
      %1277 = vmatpush.bf16.msra.mxu0 %v277
      %1278 = vmatmul.bf16.gmra.mxu0 %v1256
      %v1279 = vpop.f32.mrf.mxu0
      %v1280 = vadd.f32 0.0, %v1279
      %v1281 = vpop.f32.mrf.mxu0
      %1282 = vdwg.mxu0
      %1283 = vmatpush.bf16.msra.mxu0 %v306
      %1284 = vmatpush.bf16.msra.mxu0 %v302
      %1285 = vmatpush.bf16.msra.mxu0 %v298
      %1286 = vmatpush.bf16.msra.mxu0 %v294
      %1287 = vmatpush.bf16.msra.mxu0 %v290
      %1288 = vmatpush.bf16.msra.mxu0 %v286
      %1289 = vmatpush.bf16.msra.mxu0 %v282
      %1290 = vmatpush.bf16.msra.mxu0 %v278
      %1291 = vmatmul.bf16.gmra.mxu0 %v1256
      %v1292 = vpop.f32.mrf.mxu0
      %v1293 = vadd.f32 0.0, %v1292
      %v1294 = vpop.f32.mrf.mxu0
      %1295 = vdwg.mxu0
      %1296 = vmatpush.bf16.msra.mxu0 %v307
      %1297 = vmatpush.bf16.msra.mxu0 %v303
      %1298 = vmatpush.bf16.msra.mxu0 %v299
      %1299 = vmatpush.bf16.msra.mxu0 %v295
      %1300 = vmatpush.bf16.msra.mxu0 %v291
      %1301 = vmatpush.bf16.msra.mxu0 %v287
      %1302 = vmatpush.bf16.msra.mxu0 %v283
      %1303 = vmatpush.bf16.msra.mxu0 %v279
      %1304 = vmatmul.bf16.gmra.mxu0 %v1256
      %v1305 = vpop.f32.mrf.mxu0
      %v1306 = vadd.f32 0.0, %v1305
      %v1307 = vpop.f32.mrf.mxu0
      %1308 = vdwg.mxu0
      %v1309 = vadd.f32 %v1251, %v1267
      %v1310 = vadd.f32 %v1252, %v1280
      %v1311 = vadd.f32 %v1253, %v1293
      %v1312 = vadd.f32 %v1254, %v1306
      %v1313 = vxor.u32 %v1309, 2147483648
      %v1314 = vmul.f32 %v1313, 1.442695
      %v1315 = vpow.pop %v1314
      %v1316 = vadd.f32 %v1315, 1.0
      %v1317 = vrcp.pop %v1316
      %v1318 = vmul.f32 %v1316, %v1317
      %v1319 = vsub.f32 1.0, %v1318
      %v1320 = vmul.f32 %v1317, %v1319
      %v1321 = vadd.f32 %v1317, %v1320
      %vm1322 = vweird.f32 %v1316
      %vm1323 = vweird.f32 %v1317
      %vm1324 = vmor %vm1322, %vm1323
      %v1325 = vsel %vm1324, %v1317, %v1321
      %v1326 = vand.u32 2147483647, %v1316
      %vm1327 = vcmp.eq.f32.partialorder %v1326, 8.507059e+37
      %v1328 = vand.u32 %v1316, 2147483648
      %v1329 = vor.u32 1.1754944e-38, %v1328
      %v1330 = vsel %vm1327, %v1329, %v1325
      %v1331 = vmul.f32 1.0, %v1330
      %v1332 = vxor.u32 %v1310, 2147483648
      %v1333 = vmul.f32 %v1332, 1.442695
      %v1334 = vpow.pop %v1333
      %v1335 = vadd.f32 %v1334, 1.0
      %v1336 = vrcp.pop %v1335
      %v1337 = vmul.f32 %v1335, %v1336
      %v1338 = vsub.f32 1.0, %v1337
      %v1339 = vmul.f32 %v1336, %v1338
      %v1340 = vadd.f32 %v1336, %v1339
      %vm1341 = vweird.f32 %v1335
      %vm1342 = vweird.f32 %v1336
      %vm1343 = vmor %vm1341, %vm1342
      %v1344 = vsel %vm1343, %v1336, %v1340
      %v1345 = vand.u32 2147483647, %v1335
      %vm1346 = vcmp.eq.f32.partialorder %v1345, 8.507059e+37
      %v1347 = vand.u32 %v1335, 2147483648
      %v1348 = vor.u32 1.1754944e-38, %v1347
      %v1349 = vsel %vm1346, %v1348, %v1344
      %v1350 = vmul.f32 1.0, %v1349
      %v1351 = vtanh.pop %v1311
      %v1352 = vxor.u32 %v1312, 2147483648
      %v1353 = vmul.f32 %v1352, 1.442695
      %v1354 = vpow.pop %v1353
      %v1355 = vadd.f32 %v1354, 1.0
      %v1356 = vrcp.pop %v1355
      %v1357 = vmul.f32 %v1355, %v1356
      %v1358 = vsub.f32 1.0, %v1357
      %v1359 = vmul.f32 %v1356, %v1358
      %v1360 = vadd.f32 %v1356, %v1359
      %vm1361 = vweird.f32 %v1355
      %vm1362 = vweird.f32 %v1356
      %vm1363 = vmor %vm1361, %vm1362
      %v1364 = vsel %vm1363, %v1356, %v1360
      %v1365 = vand.u32 2147483647, %v1355
      %vm1366 = vcmp.eq.f32.partialorder %v1365, 8.507059e+37
      %v1367 = vand.u32 %v1355, 2147483648
      %v1368 = vor.u32 1.1754944e-38, %v1367
      %v1369 = vsel %vm1366, %v1368, %v1364
      %v1370 = vmul.f32 1.0, %v1369
      %v1371 = vld [vmem:[#allocation3] sm:$0xff]
      %v1372 = vmul.f32 %v1350, %v1371
      %v1373 = vmul.f32 %v1331, %v1351
      %v1374 = vadd.f32 %v1372, %v1373
      %1375 = vst [vmem:[#allocation3] sm:$0xff] %v1374
      %v1376 = vtanh.pop %v1374
      %v1377 = vmul.f32 %v1370, %v1376
      %1378 = vst [vmem:[#allocation2] sm:$0xff] %v1377
      %p1379 = scmp.eq.s32.totalorder %s13, 1
      // Predicated region
      $region33: #{lstm_over_bert.1} parent=27 // pred_check
        %p1380 = pneg %p1379
      $region34: #{lstm_over_bert.1} parent=27 // pred_check_branch
        %1382 = sbr.rel (%p1380) target = $region36
      $region35: #{lstm_over_bert.1} parent=27 // pred_region
        %v1383 = vld [vmem:[#allocation2] sm:$0xff]
        %1384 = vst [vmem:[%s2] sm:$0xff] %v1383
      $region36: #{lstm_over_bert.1} parent=27 // pred_fallthru
        _
      // Predicated region
      $region37: #{lstm_over_bert.1} parent=27 // pred_check
        %p1385 = pneg %p73
      $region38: #{lstm_over_bert.1} parent=27 // pred_check_branch
        %1387 = sbr.rel (%p1385) target = $region40
      $region39: #{lstm_over_bert.1} parent=27 // pred_region
        _
      $region40: #{lstm_over_bert.1} parent=27 // pred_fallthru
        _
      // Predicated region
      $region41: #{lstm_over_bert.1} parent=27 // pred_check
        %p1388 = pneg %p73
      $region42: #{lstm_over_bert.1} parent=27 // pred_check_branch
        %1390 = sbr.rel (%p1388) target = $region44
      $region43: #{lstm_over_bert.1} parent=27 // pred_region
        _
      $region44: #{lstm_over_bert.1} parent=27 // pred_fallthru
        _
    $region28: #{lstm_over_bert.1} parent=5 // pred_fallthru
      _
    %p1391 = scmp.le.s32.totalorder 2, %s8
    // Predicated region
    $region45: #{lstm_over_bert.1} parent=5 // pred_check
      %p1392 = pneg %p1391
    $region46: #{lstm_over_bert.1} parent=5 // pred_check_branch
      %1394 = sbr.rel (%p1392) target = $region48
    $region47: #{lstm_over_bert.1} parent=5 // pred_region
      %s1395 = ssub.s32 %s8, 2
    $region48: #{lstm_over_bert.1} parent=5 // pred_fallthru
      _
  $region6: #{lstm_over_bert.1} parent=0 // loop_footer
    %s12 = sadd.s32 1, %s8
  $region7: #{lstm_over_bert.1} parent=0 // loop_footer_branch
    %7 = sbr.rel target = $region3
  $region8: #{lstm_over_bert.1} parent=0 // loop_exit
    _

</llo_original>
